<compile_context>
chip_gen: v5e
topology: v5e:2x2
jax: 0.10.0
libtpu: 0.0.40
codegen_flags: <defaults>
</compile_context>

<pallas_src>
import functools

import jax
import jax.numpy as jnp
import numpy as np
from jax.experimental import pallas as pl
from jax.experimental.pallas import tpu as pltpu

_EPS = 1e-5
_VMEM_LIMIT_BYTES = 32 * 1024 * 1024  # safe on v5e/v6e (128 MiB) and v7x (64 MiB)


def _round_up(x, m):
    return (x + m - 1) // m * m


def _pick_row_tile(ho, target=8):
    """Largest divisor of `ho` that is <= target (bounds the live accumulator)."""
    for t in range(min(target, ho), 0, -1):
        if ho % t == 0:
            return t
    return 1


# ----------------------------------------------------------------------------
# Kernels
# ----------------------------------------------------------------------------
def _pointwise_bn_kernel(x_ref, w_ref, shift_ref, o_ref, *, relu):
    # x_ref: (tm, Cin) bf16, w_ref: (Cin, Cout) bf16 (BN scale pre-folded),
    # shift_ref: (1, Cout) f32.
    y = jnp.dot(x_ref[...], w_ref[...], preferred_element_type=jnp.float32)
    y = y + shift_ref[...]
    if relu:
        y = jnp.maximum(y, 0.0)
    o_ref[...] = y.astype(o_ref.dtype)


def _fused_conv3_tail_kernel(h1ph_ref, xs_ref, w2_ref, b2_ref, w3_ref, b3_ref,
                             wr_ref, br_ref, o_ref, *,
                             stride, dilation, Ho, Wo, row_tile):
    """cbr_2 (3x3 strided/dilated) + cb_3 (1x1) + cb_residual (1x1) + add + ReLU.

    h1ph_ref: (1, s*s, Hs, Ws, Cmid) bf16 stride-phase-split padded h1
              (element [0, pr*s+pc, i, j, c] == h1_padded[i*s+pr, j*s+pc, c])
    xs_ref:   (1, Ho, Wo, Cin)  bf16 stride-subsampled input (residual branch)
    w2_ref:   (9, Cmid, Cmid)   bf16 (BN scale folded), one matrix per tap
    w3_ref:   (Cmid, Cout)      bf16 (BN scale folded)
    wr_ref:   (Cin, Cout)       bf16 (BN scale folded)
    b*_ref:   (1, C)            f32 shifts
    o_ref:    (1, Ho, Wo, Cout) f32
    """
    s, d = stride, dilation
    Cmid = w2_ref.shape[1]
    Cin = wr_ref.shape[0]
    Cout = w3_ref.shape[1]

    # Static loop over output-row tiles keeps the f32 accumulator small.
    for r0 in range(0, Ho, row_tile):
        rt = row_tile

        # --- cbr_2: 3x3 dilated conv with the stride folded in ---------------
        acc = jnp.zeros((rt * Wo, Cmid), jnp.float32)
        for ky in range(3):
            for kx in range(3):
                p = ((ky * d) % s) * s + ((kx * d) % s)       # stride phase
                i0 = r0 + (ky * d) // s
                j0 = (kx * d) // s
                patch = h1ph_ref[0, p, i0:i0 + rt, j0:j0 + Wo, :]   # (rt, Wo, Cmid)
                acc = acc + jnp.dot(patch.reshape(rt * Wo, Cmid),
                                    w2_ref[ky * 3 + kx],
                                    preferred_element_type=jnp.float32)
        h2 = jnp.maximum(acc + b2_ref[...], 0.0).astype(jnp.bfloat16)

        # --- cb_3: 1x1 conv + BN ----------------------------------------------
        y = jnp.dot(h2, w3_ref[...], preferred_element_type=jnp.float32) + b3_ref[...]

        # --- cb_residual: strided 1x1 conv + BN -------------------------------
        xs = xs_ref[0, r0:r0 + rt, :, :].reshape(rt * Wo, Cin)
        res = jnp.dot(xs, wr_ref[...], preferred_element_type=jnp.float32) + br_ref[...]

        # --- add + final ReLU ---------------------------------------------------
        o_ref[0, r0:r0 + rt, :, :] = jnp.maximum(y + res, 0.0).reshape(
            rt, Wo, Cout).astype(o_ref.dtype)


# ----------------------------------------------------------------------------
# Pallas wrappers
# ----------------------------------------------------------------------------
def pointwise_conv_bn(x2d, w, shift, *, relu, out_dtype=jnp.bfloat16, row_block=512):
    """1x1 conv (channel matmul) with BN scale pre-folded; shift (+ReLU) epilogue."""
    M, Cin = x2d.shape
    Cout = w.shape[1]
    m_pad = _round_up(M, 8)
    tm = min(row_block, m_pad)
    m_pad = _round_up(m_pad, tm)
    if m_pad != M:
        x2d = jnp.pad(x2d, ((0, m_pad - M), (0, 0)))
    out = pl.pallas_call(
        functools.partial(_pointwise_bn_kernel, relu=relu),
        out_shape=jax.ShapeDtypeStruct((m_pad, Cout), out_dtype),
        grid=(m_pad // tm,),
        in_specs=[pl.BlockSpec((tm, Cin), lambda i: (i, 0)),
                  pl.BlockSpec((Cin, Cout), lambda i: (0, 0)),
                  pl.BlockSpec((1, Cout), lambda i: (0, 0))],
        out_specs=pl.BlockSpec((tm, Cout), lambda i: (i, 0)),
        compiler_params=pltpu.CompilerParams(
            dimension_semantics=("parallel",),
            vmem_limit_bytes=_VMEM_LIMIT_BYTES),
    )(x2d, w, shift)
    return out[:M] if m_pad != M else out


def fused_conv3_tail(h1ph, x_strided, w2, b2, w3, b3, wr, br, *,
                     stride, dilation, Ho, Wo):
    """3x3 conv + BN + ReLU + cb_3 + BN + residual conv + BN + add + ReLU."""
    N, n_phase, Hs, Ws, Cmid = h1ph.shape
    Cin = wr.shape[0]
    Cout = w3.shape[1]
    row_tile = _pick_row_tile(Ho)
    kernel = functools.partial(_fused_conv3_tail_kernel, stride=stride,
                               dilation=dilation, Ho=Ho, Wo=Wo, row_tile=row_tile)
    return pl.pallas_call(
        kernel,
        out_shape=jax.ShapeDtypeStruct((N, Ho, Wo, Cout), jnp.float32),
        grid=(N,),
        in_specs=[pl.BlockSpec((1, n_phase, Hs, Ws, Cmid), lambda n: (n, 0, 0, 0, 0)),
                  pl.BlockSpec((1, Ho, Wo, Cin), lambda n: (n, 0, 0, 0)),
                  pl.BlockSpec((9, Cmid, Cmid), lambda n: (0, 0, 0)),
                  pl.BlockSpec((1, Cmid), lambda n: (0, 0)),
                  pl.BlockSpec((Cmid, Cout), lambda n: (0, 0)),
                  pl.BlockSpec((1, Cout), lambda n: (0, 0)),
                  pl.BlockSpec((Cin, Cout), lambda n: (0, 0)),
                  pl.BlockSpec((1, Cout), lambda n: (0, 0))],
        out_specs=pl.BlockSpec((1, Ho, Wo, Cout), lambda n: (n, 0, 0, 0)),
        compiler_params=pltpu.CompilerParams(
            dimension_semantics=("parallel",),
            vmem_limit_bytes=_VMEM_LIMIT_BYTES),
    )(h1ph, x_strided, w2, b2, w3, b3, wr, br)


# ----------------------------------------------------------------------------
# Parameter setup and full forward
# ----------------------------------------------------------------------------
def _fold_bn(bn):
    gamma, beta, mean, var = bn
    scale = gamma / jnp.sqrt(var + _EPS)
    shift = beta - mean * scale
    return scale, shift


def _make_bn(key, c):
    k1, k2, k3, k4 = jax.random.split(key, 4)
    gamma = jax.random.uniform(k1, (c,), jnp.float32, 0.5, 1.5)
    beta = jax.random.normal(k2, (c,), jnp.float32) * 0.1
    mean = jax.random.normal(k3, (c,), jnp.float32) * 0.1
    var = jax.random.uniform(k4, (c,), jnp.float32, 0.5, 1.5)
    return gamma, beta, mean, var


def init_params(key, in_channels, mid_channels, out_channels):
    ks = jax.random.split(key, 8)
    # Conv weights in PyTorch OIHW layout, bias=False everywhere.
    return {
        "w1": jax.random.normal(ks[0], (mid_channels, in_channels, 1, 1), jnp.float32) * 0.1,
        "w2": jax.random.normal(ks[1], (mid_channels, mid_channels, 3, 3), jnp.float32) * 0.1,
        "w3": jax.random.normal(ks[2], (out_channels, mid_channels, 1, 1), jnp.float32) * 0.1,
        "wr": jax.random.normal(ks[3], (out_channels, in_channels, 1, 1), jnp.float32) * 0.1,
        "bn1": _make_bn(ks[4], mid_channels),
        "bn2": _make_bn(ks[5], mid_channels),
        "bn3": _make_bn(ks[6], out_channels),
        "bnr": _make_bn(ks[7], out_channels),
    }


def bottleneck_psp_forward(x_nchw, params, *, stride, dilation):
    s, d = stride, dilation
    x = jnp.transpose(x_nchw, (0, 2, 3, 1)).astype(jnp.bfloat16)    # NCHW -> NHWC, bf16
    N, H, W, Cin = x.shape
    Cmid = params["w1"].shape[0]
    Ho = (H - 1) // s + 1
    Wo = (W - 1) // s + 1

    sc1, sh1 = _fold_bn(params["bn1"])
    sc2, sh2 = _fold_bn(params["bn2"])
    sc3, sh3 = _fold_bn(params["bn3"])
    scr, shr = _fold_bn(params["bnr"])

    # BN scale folded into the conv weights (bf16); shifts stay f32.
    w1m = (params["w1"][:, :, 0, 0].T * sc1[None, :]).astype(jnp.bfloat16)   # (Cin, Cmid)
    w2m = (jnp.transpose(params["w2"], (2, 3, 1, 0)).reshape(9, Cmid, Cmid)
           * sc2[None, None, :]).astype(jnp.bfloat16)                        # (9, Cmid, Cmid)
    w3m = (params["w3"][:, :, 0, 0].T * sc3[None, :]).astype(jnp.bfloat16)   # (Cmid, Cout)
    wrm = (params["wr"][:, :, 0, 0].T * scr[None, :]).astype(jnp.bfloat16)   # (Cin, Cout)

    # --- cbr_1: 1x1 conv + BN + ReLU (pointwise matmul kernel) ----------------
    h1 = pointwise_conv_bn(x.reshape(-1, Cin), w1m, sh1.reshape(1, -1), relu=True)
    h1 = h1.reshape(N, H, W, Cmid)

    # --- stride-phase-split, zero-padded layout for the 3x3 conv --------------
    # Space-to-depth over the conv stride so the fused kernel only needs dense,
    # contiguous slices per tap (stride folded: no full-res compute + subsample).
    # TODO(synk): fold this padding / phase split into the kernels' BlockSpecs to
    # save one extra XLA pass over h1.
    hp2 = _round_up(H + 2 * d, s)
    wp2 = _round_up(W + 2 * d, s)
    h1p = jnp.pad(h1, ((0, 0), (d, hp2 - H - d), (d, wp2 - W - d), (0, 0)))
    h1ph = (h1p.reshape(N, hp2 // s, s, wp2 // s, s, Cmid)
            .transpose(0, 2, 4, 1, 3, 5)
            .reshape(N, s * s, hp2 // s, wp2 // s, Cmid))

    # Residual branch only reads every s-th pixel of x.
    x_strided = x[:, ::s, ::s, :]                                    # (N, Ho, Wo, Cin)

    # --- cbr_2 + cb_3 + cb_residual + add + ReLU (single fused kernel) --------
    out = fused_conv3_tail(h1ph, x_strided, w2m, sh2.reshape(1, -1),
                           w3m, sh3.reshape(1, -1), wrm, shr.reshape(1, -1),
                           stride=s, dilation=d, Ho=Ho, Wo=Wo)
    return jnp.transpose(out, (0, 3, 1, 2))                          # NHWC -> NCHW (f32)


# ----------------------------------------------------------------------------
# Pure-JAX reference (for correctness checking)
# ----------------------------------------------------------------------------
def _ref_conv(x, w, stride, padding, dilation):
    return jax.lax.conv_general_dilated(
        x, w, window_strides=(stride, stride),
        padding=((padding, padding), (padding, padding)),
        rhs_dilation=(dilation, dilation),
        dimension_numbers=("NCHW", "OIHW", "NCHW"))


def _ref_bn(x, bn):
    gamma, beta, mean, var = (p.reshape(1, -1, 1, 1) for p in bn)
    return (x - mean) / jnp.sqrt(var + _EPS) * gamma + beta


def reference_forward(x, params, *, stride, dilation):
    h = jnp.maximum(_ref_bn(_ref_conv(x, params["w1"], 1, 0, 1), params["bn1"]), 0.0)
    h = jnp.maximum(_ref_bn(_ref_conv(h, params["w2"], stride, dilation, dilation),
                            params["bn2"]), 0.0)
    conv = _ref_bn(_ref_conv(h, params["w3"], 1, 0, 1), params["bn3"])
    res = _ref_bn(_ref_conv(x, params["wr"], stride, 0, 1), params["bnr"])
    return jnp.maximum(conv + res, 0.0)


# ----------------------------------------------------------------------------
if __name__ == "__main__":
    key = jax.random.PRNGKey(0)
    kx_, kp_ = jax.random.split(key)

    N, Cin, H, W = 2, 8, 16, 16
    Cmid, Cout = 4, 16
    stride, dilation = 2, 1

    x = jax.random.normal(kx_, (N, Cin, H, W), jnp.float32)
    params = init_params(kp_, Cin, Cmid, Cout)

    fwd = jax.jit(functools.partial(bottleneck_psp_forward,
                                    stride=stride, dilation=dilation))
    out = jax.block_until_ready(fwd(x, params))

    ref = reference_forward(x, params, stride=stride, dilation=dilation)
    # Kernels run matmuls in bf16 (f32 accumulate); compare against the f32
    # reference with a bf16-appropriate tolerance.
    np.testing.assert_allclose(np.asarray(out), np.asarray(ref), rtol=3e-2, atol=3e-2)

    print("KERNEL_OK")
</pallas_src>

<mosaic_0001>
module attributes {stable_mosaic.version = 11 : i64} {
  func.func @_pointwise_bn_kernel(%arg0: i32, %arg1: memref<512x8xbf16, #tpu.memory_space<vmem>>, %arg2: memref<8x4xbf16, #tpu.memory_space<vmem>>, %arg3: memref<1x4xf32, #tpu.memory_space<vmem>>, %arg4: memref<512x4xbf16, #tpu.memory_space<vmem>>) attributes {dimension_semantics = [#tpu.dimension_semantics<parallel>], iteration_bounds = array<i64: 1>, scalar_prefetch = 0 : i64, scratch_operands = 0 : i64, tpu.core_type = #tpu.core_type<tc>, window_params = [{transform_indices = @transform_0, window_bounds = array<i64: 512, 8>}, {pipeline_mode = #tpu.pipeline_mode<synchronous>, transform_indices = @transform_1, window_bounds = array<i64: 8, 4>}, {pipeline_mode = #tpu.pipeline_mode<synchronous>, transform_indices = @transform_2, window_bounds = array<i64: 1, 4>}, {transform_indices = @transform_3, window_bounds = array<i64: 512, 4>}]} {
    %c0 = arith.constant 0 : index
    %c0_0 = arith.constant 0 : index
    %0 = vector.load %arg1[%c0, %c0_0] : memref<512x8xbf16, #tpu.memory_space<vmem>>, vector<512x8xbf16>
    %c0_1 = arith.constant 0 : index
    %c0_2 = arith.constant 0 : index
    %1 = vector.load %arg2[%c0_1, %c0_2] : memref<8x4xbf16, #tpu.memory_space<vmem>>, vector<8x4xbf16>
    %cst = arith.constant dense<0.000000e+00> : vector<512x4xf32>
    %2 = tpu.matmul %0, %1, %cst {dimension_numbers = #tpu.dot_dimension_numbers<[1], [0], [0], [1], [0, 0, 1, 1], [], []>} : vector<512x8xbf16>, vector<8x4xbf16>, vector<512x4xf32> -> vector<512x4xf32>
    %c0_3 = arith.constant 0 : index
    %c0_4 = arith.constant 0 : index
    %3 = vector.load %arg3[%c0_3, %c0_4] : memref<1x4xf32, #tpu.memory_space<vmem>>, vector<1x4xf32>
    %4 = vector.broadcast %3 : vector<1x4xf32> to vector<512x4xf32>
    %5 = arith.addf %2, %4 : vector<512x4xf32>
    %cst_5 = arith.constant 0.000000e+00 : f32
    %6 = vector.broadcast %cst_5 : f32 to vector<512x4xf32>
    %7 = arith.maximumf %5, %6 : vector<512x4xf32>
    %8 = arith.truncf %7 : vector<512x4xf32> to vector<512x4xbf16>
    %c0_6 = arith.constant 0 : index
    %c0_7 = arith.constant 0 : index
    %9 = vector.load %arg4[%c0_6, %c0_7] : memref<512x4xbf16, #tpu.memory_space<vmem>>, vector<512x4xbf16>
    tpu.vector_store %arg4[%c0_6, %c0_7], %8 {strides = array<i32>} : memref<512x4xbf16, #tpu.memory_space<vmem>>, vector<512x4xbf16>,
    return
  }
  func.func @transform_0(%arg0: i32) -> (i32, i32) {
    %c0_i32 = arith.constant 0 : i32
    %c0_i32_0 = arith.constant 0 : i32
    return %arg0, %c0_i32 : i32, i32
  }
  func.func @transform_1(%arg0: i32) -> (i32, i32) {
    %c0_i32 = arith.constant 0 : i32
    %c0_i32_0 = arith.constant 0 : i32
    %c0_i32_1 = arith.constant 0 : i32
    return %c0_i32, %c0_i32_0 : i32, i32
  }
  func.func @transform_2(%arg0: i32) -> (i32, i32) {
    %c0_i32 = arith.constant 0 : i32
    %c0_i32_0 = arith.constant 0 : i32
    %c0_i32_1 = arith.constant 0 : i32
    return %c0_i32, %c0_i32_0 : i32, i32
  }
  func.func @transform_3(%arg0: i32) -> (i32, i32) {
    %c0_i32 = arith.constant 0 : i32
    %c0_i32_0 = arith.constant 0 : i32
    return %arg0, %c0_i32 : i32, i32
  }
}

module attributes {stable_mosaic.version = 11 : i64} {
  func.func @_fused_conv3_tail_kernel(%arg0: i32, %arg1: memref<1x4x9x9x4xbf16, #tpu.memory_space<vmem>>, %arg2: memref<1x8x8x8xbf16, #tpu.memory_space<vmem>>, %arg3: memref<9x4x4xbf16, #tpu.memory_space<vmem>>, %arg4: memref<1x4xf32, #tpu.memory_space<vmem>>, %arg5: memref<4x16xbf16, #tpu.memory_space<vmem>>, %arg6: memref<1x16xf32, #tpu.memory_space<vmem>>, %arg7: memref<8x16xbf16, #tpu.memory_space<vmem>>, %arg8: memref<1x16xf32, #tpu.memory_space<vmem>>, %arg9: memref<1x8x8x16xf32, #tpu.memory_space<vmem>>) attributes {dimension_semantics = [#tpu.dimension_semantics<parallel>], iteration_bounds = array<i64: 2>, scalar_prefetch = 0 : i64, scratch_operands = 0 : i64, tpu.core_type = #tpu.core_type<tc>, window_params = [{transform_indices = @transform_0, window_bounds = array<i64: 1, 4, 9, 9, 4>}, {transform_indices = @transform_1, window_bounds = array<i64: 1, 8, 8, 8>}, {pipeline_mode = #tpu.pipeline_mode<synchronous>, transform_indices = @transform_2, window_bounds = array<i64: 9, 4, 4>}, {pipeline_mode = #tpu.pipeline_mode<synchronous>, transform_indices = @transform_3, window_bounds = array<i64: 1, 4>}, {pipeline_mode = #tpu.pipeline_mode<synchronous>, transform_indices = @transform_4, window_bounds = array<i64: 4, 16>}, {pipeline_mode = #tpu.pipeline_mode<synchronous>, transform_indices = @transform_5, window_bounds = array<i64: 1, 16>}, {pipeline_mode = #tpu.pipeline_mode<synchronous>, transform_indices = @transform_6, window_bounds = array<i64: 8, 16>}, {pipeline_mode = #tpu.pipeline_mode<synchronous>, transform_indices = @transform_7, window_bounds = array<i64: 1, 16>}, {transform_indices = @transform_8, window_bounds = array<i64: 1, 8, 8, 16>}]} {
    %cst = arith.constant 0.000000e+00 : f32
    %0 = vector.broadcast %cst : f32 to vector<64x4xf32>
    %c0 = arith.constant 0 : index
    %c0_0 = arith.constant 0 : index
    %c0_1 = arith.constant 0 : index
    %c0_2 = arith.constant 0 : index
    %c0_3 = arith.constant 0 : index
    %1 = vector.load %arg1[%c0, %c0_0, %c0_1, %c0_2, %c0_3] : memref<1x4x9x9x4xbf16, #tpu.memory_space<vmem>>, vector<1x1x8x8x4xbf16>
    %2 = vector.shape_cast %1 : vector<1x1x8x8x4xbf16> to vector<8x8x4xbf16>
    %3 = vector.shape_cast %2 : vector<8x8x4xbf16> to vector<64x4xbf16>
    %c0_4 = arith.constant 0 : index
    %c0_5 = arith.constant 0 : index
    %c0_6 = arith.constant 0 : index
    %4 = vector.load %arg3[%c0_4, %c0_5, %c0_6] : memref<9x4x4xbf16, #tpu.memory_space<vmem>>, vector<1x4x4xbf16>
    %5 = vector.shape_cast %4 : vector<1x4x4xbf16> to vector<4x4xbf16>
    %cst_7 = arith.constant dense<0.000000e+00> : vector<64x4xf32>
    %6 = tpu.matmul %3, %5, %cst_7 {dimension_numbers = #tpu.dot_dimension_numbers<[1], [0], [0], [1], [0, 0, 1, 1], [], []>} : vector<64x4xbf16>, vector<4x4xbf16>, vector<64x4xf32> -> vector<64x4xf32>
    %7 = arith.addf %0, %6 : vector<64x4xf32>
    %c0_8 = arith.constant 0 : index
    %c1 = arith.constant 1 : index
    %c0_9 = arith.constant 0 : index
    %c0_10 = arith.constant 0 : index
    %c0_11 = arith.constant 0 : index
    %8 = vector.load %arg1[%c0_8, %c1, %c0_9, %c0_10, %c0_11] : memref<1x4x9x9x4xbf16, #tpu.memory_space<vmem>>, vector<1x1x8x8x4xbf16>
    %9 = vector.shape_cast %8 : vector<1x1x8x8x4xbf16> to vector<8x8x4xbf16>
    %10 = vector.shape_cast %9 : vector<8x8x4xbf16> to vector<64x4xbf16>
    %c1_12 = arith.constant 1 : index
    %c0_13 = arith.constant 0 : index
    %c0_14 = arith.constant 0 : index
    %11 = vector.load %arg3[%c1_12, %c0_13, %c0_14] : memref<9x4x4xbf16, #tpu.memory_space<vmem>>, vector<1x4x4xbf16>
    %12 = vector.shape_cast %11 : vector<1x4x4xbf16> to vector<4x4xbf16>
    %cst_15 = arith.constant dense<0.000000e+00> : vector<64x4xf32>
    %13 = tpu.matmul %10, %12, %cst_15 {dimension_numbers = #tpu.dot_dimension_numbers<[1], [0], [0], [1], [0, 0, 1, 1], [], []>} : vector<64x4xbf16>, vector<4x4xbf16>, vector<64x4xf32> -> vector<64x4xf32>
    %14 = arith.addf %7, %13 : vector<64x4xf32>
    %c0_16 = arith.constant 0 : index
    %c0_17 = arith.constant 0 : index
    %c0_18 = arith.constant 0 : index
    %c1_19 = arith.constant 1 : index
    %c0_20 = arith.constant 0 : index
    %15 = vector.load %arg1[%c0_16, %c0_17, %c0_18, %c1_19, %c0_20] : memref<1x4x9x9x4xbf16, #tpu.memory_space<vmem>>, vector<1x1x8x8x4xbf16>
    %16 = vector.shape_cast %15 : vector<1x1x8x8x4xbf16> to vector<8x8x4xbf16>
    %17 = vector.shape_cast %16 : vector<8x8x4xbf16> to vector<64x4xbf16>
    %c2 = arith.constant 2 : index
    %c0_21 = arith.constant 0 : index
    %c0_22 = arith.constant 0 : index
    %18 = vector.load %arg3[%c2, %c0_21, %c0_22] : memref<9x4x4xbf16, #tpu.memory_space<vmem>>, vector<1x4x4xbf16>
    %19 = vector.shape_cast %18 : vector<1x4x4xbf16> to vector<4x4xbf16>
    %cst_23 = arith.constant dense<0.000000e+00> : vector<64x4xf32>
    %20 = tpu.matmul %17, %19, %cst_23 {dimension_numbers = #tpu.dot_dimension_numbers<[1], [0], [0], [1], [0, 0, 1, 1], [], []>} : vector<64x4xbf16>, vector<4x4xbf16>, vector<64x4xf32> -> vector<64x4xf32>
    %21 = arith.addf %14, %20 : vector<64x4xf32>
    %c0_24 = arith.constant 0 : index
    %c2_25 = arith.constant 2 : index
    %c0_26 = arith.constant 0 : index
    %c0_27 = arith.constant 0 : index
    %c0_28 = arith.constant 0 : index
    %22 = vector.load %arg1[%c0_24, %c2_25, %c0_26, %c0_27, %c0_28] : memref<1x4x9x9x4xbf16, #tpu.memory_space<vmem>>, vector<1x1x8x8x4xbf16>
    %23 = vector.shape_cast %22 : vector<1x1x8x8x4xbf16> to vector<8x8x4xbf16>
    %24 = vector.shape_cast %23 : vector<8x8x4xbf16> to vector<64x4xbf16>
    %c3 = arith.constant 3 : index
    %c0_29 = arith.constant 0 : index
    %c0_30 = arith.constant 0 : index
    %25 = vector.load %arg3[%c3, %c0_29, %c0_30] : memref<9x4x4xbf16, #tpu.memory_space<vmem>>, vector<1x4x4xbf16>
    %26 = vector.shape_cast %25 : vector<1x4x4xbf16> to vector<4x4xbf16>
    %cst_31 = arith.constant dense<0.000000e+00> : vector<64x4xf32>
    %27 = tpu.matmul %24, %26, %cst_31 {dimension_numbers = #tpu.dot_dimension_numbers<[1], [0], [0], [1], [0, 0, 1, 1], [], []>} : vector<64x4xbf16>, vector<4x4xbf16>, vector<64x4xf32> -> vector<64x4xf32>
    %28 = arith.addf %21, %27 : vector<64x4xf32>
    %c0_32 = arith.constant 0 : index
    %c3_33 = arith.constant 3 : index
    %c0_34 = arith.constant 0 : index
    %c0_35 = arith.constant 0 : index
    %c0_36 = arith.constant 0 : index
    %29 = vector.load %arg1[%c0_32, %c3_33, %c0_34, %c0_35, %c0_36] : memref<1x4x9x9x4xbf16, #tpu.memory_space<vmem>>, vector<1x1x8x8x4xbf16>
    %30 = vector.shape_cast %29 : vector<1x1x8x8x4xbf16> to vector<8x8x4xbf16>
    %31 = vector.shape_cast %30 : vector<8x8x4xbf16> to vector<64x4xbf16>
    %c4 = arith.constant 4 : index
    %c0_37 = arith.constant 0 : index
    %c0_38 = arith.constant 0 : index
    %32 = vector.load %arg3[%c4, %c0_37, %c0_38] : memref<9x4x4xbf16, #tpu.memory_space<vmem>>, vector<1x4x4xbf16>
    %33 = vector.shape_cast %32 : vector<1x4x4xbf16> to vector<4x4xbf16>
    %cst_39 = arith.constant dense<0.000000e+00> : vector<64x4xf32>
    %34 = tpu.matmul %31, %33, %cst_39 {dimension_numbers = #tpu.dot_dimension_numbers<[1], [0], [0], [1], [0, 0, 1, 1], [], []>} : vector<64x4xbf16>, vector<4x4xbf16>, vector<64x4xf32> -> vector<64x4xf32>
    %35 = arith.addf %28, %34 : vector<64x4xf32>
    %c0_40 = arith.constant 0 : index
    %c2_41 = arith.constant 2 : index
    %c0_42 = arith.constant 0 : index
    %c1_43 = arith.constant 1 : index
    %c0_44 = arith.constant 0 : index
    %36 = vector.load %arg1[%c0_40, %c2_41, %c0_42, %c1_43, %c0_44] : memref<1x4x9x9x4xbf16, #tpu.memory_space<vmem>>, vector<1x1x8x8x4xbf16>
    %37 = vector.shape_cast %36 : vector<1x1x8x8x4xbf16> to vector<8x8x4xbf16>
    %38 = vector.shape_cast %37 : vector<8x8x4xbf16> to vector<64x4xbf16>
    %c5 = arith.constant 5 : index
    %c0_45 = arith.constant 0 : index
    %c0_46 = arith.constant 0 : index
    %39 = vector.load %arg3[%c5, %c0_45, %c0_46] : memref<9x4x4xbf16, #tpu.memory_space<vmem>>, vector<1x4x4xbf16>
    %40 = vector.shape_cast %39 : vector<1x4x4xbf16> to vector<4x4xbf16>
    %cst_47 = arith.constant dense<0.000000e+00> : vector<64x4xf32>
    %41 = tpu.matmul %38, %40, %cst_47 {dimension_numbers = #tpu.dot_dimension_numbers<[1], [0], [0], [1], [0, 0, 1, 1], [], []>} : vector<64x4xbf16>, vector<4x4xbf16>, vector<64x4xf32> -> vector<64x4xf32>
    %42 = arith.addf %35, %41 : vector<64x4xf32>
    %c0_48 = arith.constant 0 : index
    %c0_49 = arith.constant 0 : index
    %c1_50 = arith.constant 1 : index
    %c0_51 = arith.constant 0 : index
    %c0_52 = arith.constant 0 : index
    %43 = vector.load %arg1[%c0_48, %c0_49, %c1_50, %c0_51, %c0_52] : memref<1x4x9x9x4xbf16, #tpu.memory_space<vmem>>, vector<1x1x8x8x4xbf16>
    %44 = vector.shape_cast %43 : vector<1x1x8x8x4xbf16> to vector<8x8x4xbf16>
    %45 = vector.shape_cast %44 : vector<8x8x4xbf16> to vector<64x4xbf16>
    %c6 = arith.constant 6 : index
    %c0_53 = arith.constant 0 : index
    %c0_54 = arith.constant 0 : index
    %46 = vector.load %arg3[%c6, %c0_53, %c0_54] : memref<9x4x4xbf16, #tpu.memory_space<vmem>>, vector<1x4x4xbf16>
    %47 = vector.shape_cast %46 : vector<1x4x4xbf16> to vector<4x4xbf16>
    %cst_55 = arith.constant dense<0.000000e+00> : vector<64x4xf32>
    %48 = tpu.matmul %45, %47, %cst_55 {dimension_numbers = #tpu.dot_dimension_numbers<[1], [0], [0], [1], [0, 0, 1, 1], [], []>} : vector<64x4xbf16>, vector<4x4xbf16>, vector<64x4xf32> -> vector<64x4xf32>
    %49 = arith.addf %42, %48 : vector<64x4xf32>
    %c0_56 = arith.constant 0 : index
    %c1_57 = arith.constant 1 : index
    %c1_58 = arith.constant 1 : index
    %c0_59 = arith.constant 0 : index
    %c0_60 = arith.constant 0 : index
    %50 = vector.load %arg1[%c0_56, %c1_57, %c1_58, %c0_59, %c0_60] : memref<1x4x9x9x4xbf16, #tpu.memory_space<vmem>>, vector<1x1x8x8x4xbf16>
    %51 = vector.shape_cast %50 : vector<1x1x8x8x4xbf16> to vector<8x8x4xbf16>
    %52 = vector.shape_cast %51 : vector<8x8x4xbf16> to vector<64x4xbf16>
    %c7 = arith.constant 7 : index
    %c0_61 = arith.constant 0 : index
    %c0_62 = arith.constant 0 : index
    %53 = vector.load %arg3[%c7, %c0_61, %c0_62] : memref<9x4x4xbf16, #tpu.memory_space<vmem>>, vector<1x4x4xbf16>
    %54 = vector.shape_cast %53 : vector<1x4x4xbf16> to vector<4x4xbf16>
    %cst_63 = arith.constant dense<0.000000e+00> : vector<64x4xf32>
    %55 = tpu.matmul %52, %54, %cst_63 {dimension_numbers = #tpu.dot_dimension_numbers<[1], [0], [0], [1], [0, 0, 1, 1], [], []>} : vector<64x4xbf16>, vector<4x4xbf16>, vector<64x4xf32> -> vector<64x4xf32>
    %56 = arith.addf %49, %55 : vector<64x4xf32>
    %c0_64 = arith.constant 0 : index
    %c0_65 = arith.constant 0 : index
    %c1_66 = arith.constant 1 : index
    %c1_67 = arith.constant 1 : index
    %c0_68 = arith.constant 0 : index
    %57 = vector.load %arg1[%c0_64, %c0_65, %c1_66, %c1_67, %c0_68] : memref<1x4x9x9x4xbf16, #tpu.memory_space<vmem>>, vector<1x1x8x8x4xbf16>
    %58 = vector.shape_cast %57 : vector<1x1x8x8x4xbf16> to vector<8x8x4xbf16>
    %59 = vector.shape_cast %58 : vector<8x8x4xbf16> to vector<64x4xbf16>
    %c8 = arith.constant 8 : index
    %c0_69 = arith.constant 0 : index
    %c0_70 = arith.constant 0 : index
    %60 = vector.load %arg3[%c8, %c0_69, %c0_70] : memref<9x4x4xbf16, #tpu.memory_space<vmem>>, vector<1x4x4xbf16>
    %61 = vector.shape_cast %60 : vector<1x4x4xbf16> to vector<4x4xbf16>
    %cst_71 = arith.constant dense<0.000000e+00> : vector<64x4xf32>
    %62 = tpu.matmul %59, %61, %cst_71 {dimension_numbers = #tpu.dot_dimension_numbers<[1], [0], [0], [1], [0, 0, 1, 1], [], []>} : vector<64x4xbf16>, vector<4x4xbf16>, vector<64x4xf32> -> vector<64x4xf32>
    %63 = arith.addf %56, %62 : vector<64x4xf32>
    %c0_72 = arith.constant 0 : index
    %c0_73 = arith.constant 0 : index
    %64 = vector.load %arg4[%c0_72, %c0_73] : memref<1x4xf32, #tpu.memory_space<vmem>>, vector<1x4xf32>
    %65 = vector.broadcast %64 : vector<1x4xf32> to vector<64x4xf32>
    %66 = arith.addf %63, %65 : vector<64x4xf32>
    %cst_74 = arith.constant 0.000000e+00 : f32
    %67 = vector.broadcast %cst_74 : f32 to vector<64x4xf32>
    %68 = arith.maximumf %66, %67 : vector<64x4xf32>
    %69 = arith.truncf %68 : vector<64x4xf32> to vector<64x4xbf16>
    %c0_75 = arith.constant 0 : index
    %c0_76 = arith.constant 0 : index
    %70 = vector.load %arg5[%c0_75, %c0_76] : memref<4x16xbf16, #tpu.memory_space<vmem>>, vector<4x16xbf16>
    %cst_77 = arith.constant dense<0.000000e+00> : vector<64x16xf32>
    %71 = tpu.matmul %69, %70, %cst_77 {dimension_numbers = #tpu.dot_dimension_numbers<[1], [0], [0], [1], [0, 0, 1, 1], [], []>} : vector<64x4xbf16>, vector<4x16xbf16>, vector<64x16xf32> -> vector<64x16xf32>
    %c0_78 = arith.constant 0 : index
    %c0_79 = arith.constant 0 : index
    %72 = vector.load %arg6[%c0_78, %c0_79] : memref<1x16xf32, #tpu.memory_space<vmem>>, vector<1x16xf32>
    %73 = vector.broadcast %72 : vector<1x16xf32> to vector<64x16xf32>
    %74 = arith.addf %71, %73 : vector<64x16xf32>
    %c0_80 = arith.constant 0 : index
    %c0_81 = arith.constant 0 : index
    %c0_82 = arith.constant 0 : index
    %c0_83 = arith.constant 0 : index
    %75 = vector.load %arg2[%c0_80, %c0_81, %c0_82, %c0_83] : memref<1x8x8x8xbf16, #tpu.memory_space<vmem>>, vector<1x8x8x8xbf16>
    %76 = vector.shape_cast %75 : vector<1x8x8x8xbf16> to vector<8x8x8xbf16>
    %77 = vector.shape_cast %76 : vector<8x8x8xbf16> to vector<64x8xbf16>
    %c0_84 = arith.constant 0 : index
    %c0_85 = arith.constant 0 : index
    %78 = vector.load %arg7[%c0_84, %c0_85] : memref<8x16xbf16, #tpu.memory_space<vmem>>, vector<8x16xbf16>
    %cst_86 = arith.constant dense<0.000000e+00> : vector<64x16xf32>
    %79 = tpu.matmul %77, %78, %cst_86 {dimension_numbers = #tpu.dot_dimension_numbers<[1], [0], [0], [1], [0, 0, 1, 1], [], []>} : vector<64x8xbf16>, vector<8x16xbf16>, vector<64x16xf32> -> vector<64x16xf32>
    %c0_87 = arith.constant 0 : index
    %c0_88 = arith.constant 0 : index
    %80 = vector.load %arg8[%c0_87, %c0_88] : memref<1x16xf32, #tpu.memory_space<vmem>>, vector<1x16xf32>
    %81 = vector.broadcast %80 : vector<1x16xf32> to vector<64x16xf32>
    %82 = arith.addf %79, %81 : vector<64x16xf32>
    %83 = arith.addf %74, %82 : vector<64x16xf32>
    %cst_89 = arith.constant 0.000000e+00 : f32
    %84 = vector.broadcast %cst_89 : f32 to vector<64x16xf32>
    %85 = arith.maximumf %83, %84 : vector<64x16xf32>
    %86 = vector.shape_cast %85 : vector<64x16xf32> to vector<8x8x16xf32>
    %c0_90 = arith.constant 0 : index
    %c0_91 = arith.constant 0 : index
    %c0_92 = arith.constant 0 : index
    %c0_93 = arith.constant 0 : index
    %87 = vector.load %arg9[%c0_90, %c0_91, %c0_92, %c0_93] : memref<1x8x8x16xf32, #tpu.memory_space<vmem>>, vector<1x8x8x16xf32>
    %88 = vector.shape_cast %87 : vector<1x8x8x16xf32> to vector<8x8x16xf32>
    %89 = vector.shape_cast %86 : vector<8x8x16xf32> to vector<1x8x8x16xf32>
    tpu.vector_store %arg9[%c0_90, %c0_91, %c0_92, %c0_93], %89 {strides = array<i32>} : memref<1x8x8x16xf32, #tpu.memory_space<vmem>>, vector<1x8x8x16xf32>,
    return
  }
  func.func @transform_0(%arg0: i32) -> (i32, i32, i32, i32, i32) {
    %c0_i32 = arith.constant 0 : i32
    %c0_i32_0 = arith.constant 0 : i32
    %c0_i32_1 = arith.constant 0 : i32
    %c0_i32_2 = arith.constant 0 : i32
    %c0_i32_3 = arith.constant 0 : i32
    return %arg0, %c0_i32, %c0_i32_0, %c0_i32_1, %c0_i32_2 : i32, i32, i32, i32, i32
  }
  func.func @transform_1(%arg0: i32) -> (i32, i32, i32, i32) {
    %c0_i32 = arith.constant 0 : i32
    %c0_i32_0 = arith.constant 0 : i32
    %c0_i32_1 = arith.constant 0 : i32
    %c0_i32_2 = arith.constant 0 : i32
    return %arg0, %c0_i32, %c0_i32_0, %c0_i32_1 : i32, i32, i32, i32
  }
  func.func @transform_2(%arg0: i32) -> (i32, i32, i32) {
    %c0_i32 = arith.constant 0 : i32
    %c0_i32_0 = arith.constant 0 : i32
    %c0_i32_1 = arith.constant 0 : i32
    %c0_i32_2 = arith.constant 0 : i32
    return %c0_i32, %c0_i32_0, %c0_i32_1 : i32, i32, i32
  }
  func.func @transform_3(%arg0: i32) -> (i32, i32) {
    %c0_i32 = arith.constant 0 : i32
    %c0_i32_0 = arith.constant 0 : i32
    %c0_i32_1 = arith.constant 0 : i32
    return %c0_i32, %c0_i32_0 : i32, i32
  }
  func.func @transform_4(%arg0: i32) -> (i32, i32) {
    %c0_i32 = arith.constant 0 : i32
    %c0_i32_0 = arith.constant 0 : i32
    %c0_i32_1 = arith.constant 0 : i32
    return %c0_i32, %c0_i32_0 : i32, i32
  }
  func.func @transform_5(%arg0: i32) -> (i32, i32) {
    %c0_i32 = arith.constant 0 : i32
    %c0_i32_0 = arith.constant 0 : i32
    %c0_i32_1 = arith.constant 0 : i32
    return %c0_i32, %c0_i32_0 : i32, i32
  }
  func.func @transform_6(%arg0: i32) -> (i32, i32) {
    %c0_i32 = arith.constant 0 : i32
    %c0_i32_0 = arith.constant 0 : i32
    %c0_i32_1 = arith.constant 0 : i32
    return %c0_i32, %c0_i32_0 : i32, i32
  }
  func.func @transform_7(%arg0: i32) -> (i32, i32) {
    %c0_i32 = arith.constant 0 : i32
    %c0_i32_0 = arith.constant 0 : i32
    %c0_i32_1 = arith.constant 0 : i32
    return %c0_i32, %c0_i32_0 : i32, i32
  }
  func.func @transform_8(%arg0: i32) -> (i32, i32, i32, i32) {
    %c0_i32 = arith.constant 0 : i32
    %c0_i32_0 = arith.constant 0 : i32
    %c0_i32_1 = arith.constant 0 : i32
    %c0_i32_2 = arith.constant 0 : i32
    return %arg0, %c0_i32, %c0_i32_0, %c0_i32_1 : i32, i32, i32, i32
  }
}

</mosaic_0001>

<llo_original>
// kernel: bottleneck_psp_forward.2
$region0: #{bottleneck_psp_forward.2}
  #allocation0 [shape = 'u32[]', space=smem, size = 0x4, offset = 0x4, fixed_abs, tag = 'smem constant byte address 0x4 - core index']
  #allocation1 [shape = 'u32[72,128]{1,0:T(1,128)}', space=vmem, size = 0x9000, scoped, tag = 'internal scratch']
  %s0 = inlined_call_operand.vmem [shape: bf16[512,8], index: 0, kind: input, shape index: {}]
  %s1 = inlined_call_operand.vmem [shape: bf16[8,4], index: 1, kind: input, shape index: {}]
  %s2 = inlined_call_operand.vmem [shape: f32[1,4], index: 2, kind: input, shape index: {}]
  %s3 = inlined_call_operand.vmem [shape: bf16[512,4], index: 3, kind: output, shape index: {}]
  %s4 = sld [smem:[#allocation0]]
  $region22: #{bottleneck_psp_forward.2} parent=0
    _
  %s6 = ssub.s32 1, %s4
  %s7 = scalar_select 0, %s6, %s4
  // Predicated region
  $region2: #{bottleneck_psp_forward.2} parent=0 // pred_check
    _
  $region3: #{bottleneck_psp_forward.2} parent=0 // pred_check_branch
    %9 = sbr.rel (0) target = $region5
  $region4: #{bottleneck_psp_forward.2} parent=0 // pred_region
    _
  $region5: #{bottleneck_psp_forward.2} parent=0 // pred_fallthru
    _
  // Predicated region
  $region6: #{bottleneck_psp_forward.2} parent=0 // pred_check
    _
  $region7: #{bottleneck_psp_forward.2} parent=0 // pred_check_branch
    %11 = sbr.rel (0) target = $region9
  $region8: #{bottleneck_psp_forward.2} parent=0 // pred_region
    _
  $region9: #{bottleneck_psp_forward.2} parent=0 // pred_fallthru
    _
  // Predicated region
  $region10: #{bottleneck_psp_forward.2} parent=0 // pred_check
    _
  $region11: #{bottleneck_psp_forward.2} parent=0 // pred_check_branch
    %13 = sbr.rel (0) target = $region13
  $region12: #{bottleneck_psp_forward.2} parent=0 // pred_region
    _
  $region13: #{bottleneck_psp_forward.2} parent=0 // pred_fallthru
    _
  %v15 = vld [vmem:[%s0] sm:$0xf]
  %v16 = vld [vmem:[%s0 + $0x4] sm:$0xf]
  %v17 = vld [vmem:[%s0 + $0x8] sm:$0xf]
  %v18 = vld [vmem:[%s0 + $0xc] sm:$0xf]
  %v19 = vld [vmem:[%s0 + $0x10] sm:$0xf]
  %v20 = vld [vmem:[%s0 + $0x14] sm:$0xf]
  %v21 = vld [vmem:[%s0 + $0x18] sm:$0xf]
  %v22 = vld [vmem:[%s0 + $0x1c] sm:$0xf]
  %v23 = vld [vmem:[%s0 + $0x20] sm:$0xf]
  %v24 = vld [vmem:[%s0 + $0x24] sm:$0xf]
  %v25 = vld [vmem:[%s0 + $0x28] sm:$0xf]
  %v26 = vld [vmem:[%s0 + $0x2c] sm:$0xf]
  %v27 = vld [vmem:[%s0 + $0x30] sm:$0xf]
  %v28 = vld [vmem:[%s0 + $0x34] sm:$0xf]
  %v29 = vld [vmem:[%s0 + $0x38] sm:$0xf]
  %v30 = vld [vmem:[%s0 + $0x3c] sm:$0xf]
  %v31 = vld [vmem:[%s0 + $0x40] sm:$0xf]
  %v32 = vld [vmem:[%s0 + $0x44] sm:$0xf]
  %v33 = vld [vmem:[%s0 + $0x48] sm:$0xf]
  %v34 = vld [vmem:[%s0 + $0x4c] sm:$0xf]
  %v35 = vld [vmem:[%s0 + $0x50] sm:$0xf]
  %v36 = vld [vmem:[%s0 + $0x54] sm:$0xf]
  %v37 = vld [vmem:[%s0 + $0x58] sm:$0xf]
  %v38 = vld [vmem:[%s0 + $0x5c] sm:$0xf]
  %v39 = vld [vmem:[%s0 + $0x60] sm:$0xf]
  %v40 = vld [vmem:[%s0 + $0x64] sm:$0xf]
  %v41 = vld [vmem:[%s0 + $0x68] sm:$0xf]
  %v42 = vld [vmem:[%s0 + $0x6c] sm:$0xf]
  %v43 = vld [vmem:[%s0 + $0x70] sm:$0xf]
  %v44 = vld [vmem:[%s0 + $0x74] sm:$0xf]
  %v45 = vld [vmem:[%s0 + $0x78] sm:$0xf]
  %v46 = vld [vmem:[%s0 + $0x7c] sm:$0xf]
  %v47 = vld [vmem:[%s0 + $0x80] sm:$0xf]
  %v48 = vld [vmem:[%s0 + $0x84] sm:$0xf]
  %v49 = vld [vmem:[%s0 + $0x88] sm:$0xf]
  %v50 = vld [vmem:[%s0 + $0x8c] sm:$0xf]
  %v51 = vld [vmem:[%s0 + $0x90] sm:$0xf]
  %v52 = vld [vmem:[%s0 + $0x94] sm:$0xf]
  %v53 = vld [vmem:[%s0 + $0x98] sm:$0xf]
  %v54 = vld [vmem:[%s0 + $0x9c] sm:$0xf]
  %v55 = vld [vmem:[%s0 + $0xa0] sm:$0xf]
  %v56 = vld [vmem:[%s0 + $0xa4] sm:$0xf]
  %v57 = vld [vmem:[%s0 + $0xa8] sm:$0xf]
  %v58 = vld [vmem:[%s0 + $0xac] sm:$0xf]
  %v59 = vld [vmem:[%s0 + $0xb0] sm:$0xf]
  %v60 = vld [vmem:[%s0 + $0xb4] sm:$0xf]
  %v61 = vld [vmem:[%s0 + $0xb8] sm:$0xf]
  %v62 = vld [vmem:[%s0 + $0xbc] sm:$0xf]
  %v63 = vld [vmem:[%s0 + $0xc0] sm:$0xf]
  %v64 = vld [vmem:[%s0 + $0xc4] sm:$0xf]
  %v65 = vld [vmem:[%s0 + $0xc8] sm:$0xf]
  %v66 = vld [vmem:[%s0 + $0xcc] sm:$0xf]
  %v67 = vld [vmem:[%s0 + $0xd0] sm:$0xf]
  %v68 = vld [vmem:[%s0 + $0xd4] sm:$0xf]
  %v69 = vld [vmem:[%s0 + $0xd8] sm:$0xf]
  %v70 = vld [vmem:[%s0 + $0xdc] sm:$0xf]
  %v71 = vld [vmem:[%s0 + $0xe0] sm:$0xf]
  %v72 = vld [vmem:[%s0 + $0xe4] sm:$0xf]
  %v73 = vld [vmem:[%s0 + $0xe8] sm:$0xf]
  %v74 = vld [vmem:[%s0 + $0xec] sm:$0xf]
  %v75 = vld [vmem:[%s0 + $0xf0] sm:$0xf]
  %v76 = vld [vmem:[%s0 + $0xf4] sm:$0xf]
  %v77 = vld [vmem:[%s0 + $0xf8] sm:$0xf]
  %v78 = vld [vmem:[%s0 + $0xfc] sm:$0xf]
  %v79 = vld [vmem:[%s1] sm:$0xf]
  %v80 = vld [vmem:[%s2] sm:$0x1]
  %v82 = vperm.slane %v80, 0
  %v148 = vunpack.c.l.b16 %v15
  %v149 = vunpack.c.l.b16 %v16
  %v150 = vunpack.c.l.b16 %v17
  %v151 = vunpack.c.l.b16 %v18
  %v152 = vunpack.c.l.b16 %v19
  %v153 = vunpack.c.l.b16 %v20
  %v154 = vunpack.c.l.b16 %v21
  %v155 = vunpack.c.l.b16 %v22
  %v156 = vunpack.c.l.b16 %v23
  %v157 = vunpack.c.l.b16 %v24
  %v158 = vunpack.c.l.b16 %v25
  %v159 = vunpack.c.l.b16 %v26
  %v160 = vunpack.c.l.b16 %v27
  %v161 = vunpack.c.l.b16 %v28
  %v162 = vunpack.c.l.b16 %v29
  %v163 = vunpack.c.l.b16 %v30
  %v164 = vunpack.c.l.b16 %v31
  %v165 = vunpack.c.l.b16 %v32
  %v166 = vunpack.c.l.b16 %v33
  %v167 = vunpack.c.l.b16 %v34
  %v168 = vunpack.c.l.b16 %v35
  %v169 = vunpack.c.l.b16 %v36
  %v170 = vunpack.c.l.b16 %v37
  %v171 = vunpack.c.l.b16 %v38
  %v172 = vunpack.c.l.b16 %v39
  %v173 = vunpack.c.l.b16 %v40
  %v174 = vunpack.c.l.b16 %v41
  %v175 = vunpack.c.l.b16 %v42
  %v176 = vunpack.c.l.b16 %v43
  %v177 = vunpack.c.l.b16 %v44
  %v178 = vunpack.c.l.b16 %v45
  %v179 = vunpack.c.l.b16 %v46
  %v180 = vunpack.c.l.b16 %v47
  %v181 = vunpack.c.l.b16 %v48
  %v182 = vunpack.c.l.b16 %v49
  %v183 = vunpack.c.l.b16 %v50
  %v184 = vunpack.c.l.b16 %v51
  %v185 = vunpack.c.l.b16 %v52
  %v186 = vunpack.c.l.b16 %v53
  %v187 = vunpack.c.l.b16 %v54
  %v188 = vunpack.c.l.b16 %v55
  %v189 = vunpack.c.l.b16 %v56
  %v190 = vunpack.c.l.b16 %v57
  %v191 = vunpack.c.l.b16 %v58
  %v192 = vunpack.c.l.b16 %v59
  %v193 = vunpack.c.l.b16 %v60
  %v194 = vunpack.c.l.b16 %v61
  %v195 = vunpack.c.l.b16 %v62
  %v196 = vunpack.c.l.b16 %v63
  %v197 = vunpack.c.l.b16 %v64
  %v198 = vunpack.c.l.b16 %v65
  %v199 = vunpack.c.l.b16 %v66
  %v200 = vunpack.c.l.b16 %v67
  %v201 = vunpack.c.l.b16 %v68
  %v202 = vunpack.c.l.b16 %v69
  %v203 = vunpack.c.l.b16 %v70
  %v204 = vunpack.c.l.b16 %v71
  %v205 = vunpack.c.l.b16 %v72
  %v206 = vunpack.c.l.b16 %v73
  %v207 = vunpack.c.l.b16 %v74
  %v208 = vunpack.c.l.b16 %v75
  %v209 = vunpack.c.l.b16 %v76
  %v210 = vunpack.c.l.b16 %v77
  %v211 = vunpack.c.l.b16 %v78
  %v212 = vpack.c.b16 %v149, %v148
  %v213 = vpack.c.b16 %v151, %v150
  %v214 = vpack.c.b16 %v153, %v152
  %v215 = vpack.c.b16 %v155, %v154
  %v216 = vpack.c.b16 %v157, %v156
  %v217 = vpack.c.b16 %v159, %v158
  %v218 = vpack.c.b16 %v161, %v160
  %v219 = vpack.c.b16 %v163, %v162
  %v220 = vpack.c.b16 %v165, %v164
  %v221 = vpack.c.b16 %v167, %v166
  %v222 = vpack.c.b16 %v169, %v168
  %v223 = vpack.c.b16 %v171, %v170
  %v224 = vpack.c.b16 %v173, %v172
  %v225 = vpack.c.b16 %v175, %v174
  %v226 = vpack.c.b16 %v177, %v176
  %v227 = vpack.c.b16 %v179, %v178
  %v228 = vpack.c.b16 %v181, %v180
  %v229 = vpack.c.b16 %v183, %v182
  %v230 = vpack.c.b16 %v185, %v184
  %v231 = vpack.c.b16 %v187, %v186
  %v232 = vpack.c.b16 %v189, %v188
  %v233 = vpack.c.b16 %v191, %v190
  %v234 = vpack.c.b16 %v193, %v192
  %v235 = vpack.c.b16 %v195, %v194
  %v236 = vpack.c.b16 %v197, %v196
  %v237 = vpack.c.b16 %v199, %v198
  %v238 = vpack.c.b16 %v201, %v200
  %v239 = vpack.c.b16 %v203, %v202
  %v240 = vpack.c.b16 %v205, %v204
  %v241 = vpack.c.b16 %v207, %v206
  %v242 = vpack.c.b16 %v209, %v208
  %v243 = vpack.c.b16 %v211, %v210
  %vm244 = vcmask 64512
  %v246 = vsel %vm244, %v212, 0
  %v249 = vsel %vm244, %v213, 0
  %v252 = vsel %vm244, %v214, 0
  %v255 = vsel %vm244, %v215, 0
  %v258 = vsel %vm244, %v216, 0
  %v261 = vsel %vm244, %v217, 0
  %v264 = vsel %vm244, %v218, 0
  %v267 = vsel %vm244, %v219, 0
  %v270 = vsel %vm244, %v220, 0
  %v273 = vsel %vm244, %v221, 0
  %v276 = vsel %vm244, %v222, 0
  %v279 = vsel %vm244, %v223, 0
  %v282 = vsel %vm244, %v224, 0
  %v285 = vsel %vm244, %v225, 0
  %v288 = vsel %vm244, %v226, 0
  %v291 = vsel %vm244, %v227, 0
  %v294 = vsel %vm244, %v228, 0
  %v297 = vsel %vm244, %v229, 0
  %v300 = vsel %vm244, %v230, 0
  %v303 = vsel %vm244, %v231, 0
  %v306 = vsel %vm244, %v232, 0
  %v309 = vsel %vm244, %v233, 0
  %v312 = vsel %vm244, %v234, 0
  %v315 = vsel %vm244, %v235, 0
  %v318 = vsel %vm244, %v236, 0
  %v321 = vsel %vm244, %v237, 0
  %v324 = vsel %vm244, %v238, 0
  %v327 = vsel %vm244, %v239, 0
  %v330 = vsel %vm244, %v240, 0
  %v333 = vsel %vm244, %v241, 0
  %v336 = vsel %vm244, %v242, 0
  %v339 = vsel %vm244, %v243, 0
  %vm341 = vcmask 1043456
  %v343 = vsel %vm341, %v79, 0
  %345 = vmatpush.bf16.msra.mxu0 0
  %346 = vmatpush.bf16.msra.mxu0 0
  %347 = vmatpush.bf16.msra.mxu0 0
  %348 = vmatpush.bf16.msra.mxu0 0
  %349 = vmatpush.bf16.msra.mxu0 0
  %350 = vmatpush.bf16.msra.mxu0 0
  %351 = vmatpush.bf16.msra.mxu0 0
  %352 = vmatpush.bf16.msra.mxu0 %v343
  %353 = vmatmul.bf16.gmra.mxu0 %v246
  %v354 = vpop.f32.mrf.mxu0
  %v355 = vadd.f32 %v82, %v354
  %v356 = vpop.f32.mrf.mxu0
  %v357 = vadd.f32 %v82, %v356
  %358 = vmatmul.bf16.gmra.mxu0 %v249
  %v359 = vpop.f32.mrf.mxu0
  %v360 = vadd.f32 %v82, %v359
  %v361 = vpop.f32.mrf.mxu0
  %v362 = vadd.f32 %v82, %v361
  %363 = vmatmul.bf16.gmra.mxu0 %v252
  %v364 = vpop.f32.mrf.mxu0
  %v365 = vadd.f32 %v82, %v364
  %v366 = vpop.f32.mrf.mxu0
  %v367 = vadd.f32 %v82, %v366
  %368 = vmatmul.bf16.gmra.mxu0 %v255
  %v369 = vpop.f32.mrf.mxu0
  %v370 = vadd.f32 %v82, %v369
  %v371 = vpop.f32.mrf.mxu0
  %v372 = vadd.f32 %v82, %v371
  %373 = vmatmul.bf16.gmra.mxu0 %v258
  %v374 = vpop.f32.mrf.mxu0
  %v375 = vadd.f32 %v82, %v374
  %v376 = vpop.f32.mrf.mxu0
  %v377 = vadd.f32 %v82, %v376
  %378 = vmatmul.bf16.gmra.mxu0 %v261
  %v379 = vpop.f32.mrf.mxu0
  %v380 = vadd.f32 %v82, %v379
  %v381 = vpop.f32.mrf.mxu0
  %v382 = vadd.f32 %v82, %v381
  %383 = vmatmul.bf16.gmra.mxu0 %v264
  %v384 = vpop.f32.mrf.mxu0
  %v385 = vadd.f32 %v82, %v384
  %v386 = vpop.f32.mrf.mxu0
  %v387 = vadd.f32 %v82, %v386
  %388 = vmatmul.bf16.gmra.mxu0 %v267
  %v389 = vpop.f32.mrf.mxu0
  %v390 = vadd.f32 %v82, %v389
  %v391 = vpop.f32.mrf.mxu0
  %v392 = vadd.f32 %v82, %v391
  %393 = vmatmul.bf16.gmra.mxu0 %v270
  %v394 = vpop.f32.mrf.mxu0
  %v395 = vadd.f32 %v82, %v394
  %v396 = vpop.f32.mrf.mxu0
  %v397 = vadd.f32 %v82, %v396
  %398 = vmatmul.bf16.gmra.mxu0 %v273
  %v399 = vpop.f32.mrf.mxu0
  %v400 = vadd.f32 %v82, %v399
  %v401 = vpop.f32.mrf.mxu0
  %v402 = vadd.f32 %v82, %v401
  %403 = vmatmul.bf16.gmra.mxu0 %v276
  %v404 = vpop.f32.mrf.mxu0
  %v405 = vadd.f32 %v82, %v404
  %v406 = vpop.f32.mrf.mxu0
  %v407 = vadd.f32 %v82, %v406
  %408 = vmatmul.bf16.gmra.mxu0 %v279
  %v409 = vpop.f32.mrf.mxu0
  %v410 = vadd.f32 %v82, %v409
  %v411 = vpop.f32.mrf.mxu0
  %v412 = vadd.f32 %v82, %v411
  %413 = vmatmul.bf16.gmra.mxu0 %v282
  %v414 = vpop.f32.mrf.mxu0
  %v415 = vadd.f32 %v82, %v414
  %v416 = vpop.f32.mrf.mxu0
  %v417 = vadd.f32 %v82, %v416
  %418 = vmatmul.bf16.gmra.mxu0 %v285
  %v419 = vpop.f32.mrf.mxu0
  %v420 = vadd.f32 %v82, %v419
  %v421 = vpop.f32.mrf.mxu0
  %v422 = vadd.f32 %v82, %v421
  %423 = vmatmul.bf16.gmra.mxu0 %v288
  %v424 = vpop.f32.mrf.mxu0
  %v425 = vadd.f32 %v82, %v424
  %v426 = vpop.f32.mrf.mxu0
  %v427 = vadd.f32 %v82, %v426
  %428 = vmatmul.bf16.gmra.mxu0 %v291
  %v429 = vpop.f32.mrf.mxu0
  %v430 = vadd.f32 %v82, %v429
  %v431 = vpop.f32.mrf.mxu0
  %v432 = vadd.f32 %v82, %v431
  %433 = vmatmul.bf16.gmra.mxu0 %v294
  %v434 = vpop.f32.mrf.mxu0
  %v435 = vadd.f32 %v82, %v434
  %v436 = vpop.f32.mrf.mxu0
  %v437 = vadd.f32 %v82, %v436
  %438 = vmatmul.bf16.gmra.mxu0 %v297
  %v439 = vpop.f32.mrf.mxu0
  %v440 = vadd.f32 %v82, %v439
  %v441 = vpop.f32.mrf.mxu0
  %v442 = vadd.f32 %v82, %v441
  %443 = vmatmul.bf16.gmra.mxu0 %v300
  %v444 = vpop.f32.mrf.mxu0
  %v445 = vadd.f32 %v82, %v444
  %v446 = vpop.f32.mrf.mxu0
  %v447 = vadd.f32 %v82, %v446
  %448 = vmatmul.bf16.gmra.mxu0 %v303
  %v449 = vpop.f32.mrf.mxu0
  %v450 = vadd.f32 %v82, %v449
  %v451 = vpop.f32.mrf.mxu0
  %v452 = vadd.f32 %v82, %v451
  %453 = vmatmul.bf16.gmra.mxu0 %v306
  %v454 = vpop.f32.mrf.mxu0
  %v455 = vadd.f32 %v82, %v454
  %v456 = vpop.f32.mrf.mxu0
  %v457 = vadd.f32 %v82, %v456
  %458 = vmatmul.bf16.gmra.mxu0 %v309
  %v459 = vpop.f32.mrf.mxu0
  %v460 = vadd.f32 %v82, %v459
  %v461 = vpop.f32.mrf.mxu0
  %v462 = vadd.f32 %v82, %v461
  %463 = vmatmul.bf16.gmra.mxu0 %v312
  %v464 = vpop.f32.mrf.mxu0
  %v465 = vadd.f32 %v82, %v464
  %v466 = vpop.f32.mrf.mxu0
  %v467 = vadd.f32 %v82, %v466
  %468 = vmatmul.bf16.gmra.mxu0 %v315
  %v469 = vpop.f32.mrf.mxu0
  %v470 = vadd.f32 %v82, %v469
  %v471 = vpop.f32.mrf.mxu0
  %v472 = vadd.f32 %v82, %v471
  %473 = vmatmul.bf16.gmra.mxu0 %v318
  %v474 = vpop.f32.mrf.mxu0
  %v475 = vadd.f32 %v82, %v474
  %v476 = vpop.f32.mrf.mxu0
  %v477 = vadd.f32 %v82, %v476
  %478 = vmatmul.bf16.gmra.mxu0 %v321
  %v479 = vpop.f32.mrf.mxu0
  %v480 = vadd.f32 %v82, %v479
  %v481 = vpop.f32.mrf.mxu0
  %v482 = vadd.f32 %v82, %v481
  %483 = vmatmul.bf16.gmra.mxu0 %v324
  %v484 = vpop.f32.mrf.mxu0
  %v485 = vadd.f32 %v82, %v484
  %v486 = vpop.f32.mrf.mxu0
  %v487 = vadd.f32 %v82, %v486
  %488 = vmatmul.bf16.gmra.mxu0 %v327
  %v489 = vpop.f32.mrf.mxu0
  %v490 = vadd.f32 %v82, %v489
  %v491 = vpop.f32.mrf.mxu0
  %v492 = vadd.f32 %v82, %v491
  %493 = vmatmul.bf16.gmra.mxu0 %v330
  %v494 = vpop.f32.mrf.mxu0
  %v495 = vadd.f32 %v82, %v494
  %v496 = vpop.f32.mrf.mxu0
  %v497 = vadd.f32 %v82, %v496
  %498 = vmatmul.bf16.gmra.mxu0 %v333
  %v499 = vpop.f32.mrf.mxu0
  %v500 = vadd.f32 %v82, %v499
  %v501 = vpop.f32.mrf.mxu0
  %v502 = vadd.f32 %v82, %v501
  %503 = vmatmul.bf16.gmra.mxu0 %v336
  %v504 = vpop.f32.mrf.mxu0
  %v505 = vadd.f32 %v82, %v504
  %v506 = vpop.f32.mrf.mxu0
  %v507 = vadd.f32 %v82, %v506
  %508 = vmatmul.bf16.gmra.mxu0 %v339
  %v509 = vpop.f32.mrf.mxu0
  %v510 = vadd.f32 %v82, %v509
  %v511 = vpop.f32.mrf.mxu0
  %v512 = vadd.f32 %v82, %v511
  %513 = vdwg.mxu0
  %v514 = vmax.f32 %v355, 0.0
  %v515 = vmax.f32 %v357, 0.0
  %v516 = vmax.f32 %v360, 0.0
  %v517 = vmax.f32 %v362, 0.0
  %v518 = vmax.f32 %v365, 0.0
  %v519 = vmax.f32 %v367, 0.0
  %v520 = vmax.f32 %v370, 0.0
  %v521 = vmax.f32 %v372, 0.0
  %v522 = vmax.f32 %v375, 0.0
  %v523 = vmax.f32 %v377, 0.0
  %v524 = vmax.f32 %v380, 0.0
  %v525 = vmax.f32 %v382, 0.0
  %v526 = vmax.f32 %v385, 0.0
  %v527 = vmax.f32 %v387, 0.0
  %v528 = vmax.f32 %v390, 0.0
  %v529 = vmax.f32 %v392, 0.0
  %v530 = vmax.f32 %v395, 0.0
  %v531 = vmax.f32 %v397, 0.0
  %v532 = vmax.f32 %v400, 0.0
  %v533 = vmax.f32 %v402, 0.0
  %v534 = vmax.f32 %v405, 0.0
  %v535 = vmax.f32 %v407, 0.0
  %v536 = vmax.f32 %v410, 0.0
  %v537 = vmax.f32 %v412, 0.0
  %v538 = vmax.f32 %v415, 0.0
  %v539 = vmax.f32 %v417, 0.0
  %v540 = vmax.f32 %v420, 0.0
  %v541 = vmax.f32 %v422, 0.0
  %v542 = vmax.f32 %v425, 0.0
  %v543 = vmax.f32 %v427, 0.0
  %v544 = vmax.f32 %v430, 0.0
  %v545 = vmax.f32 %v432, 0.0
  %v546 = vmax.f32 %v435, 0.0
  %v547 = vmax.f32 %v437, 0.0
  %v548 = vmax.f32 %v440, 0.0
  %v549 = vmax.f32 %v442, 0.0
  %v550 = vmax.f32 %v445, 0.0
  %v551 = vmax.f32 %v447, 0.0
  %v552 = vmax.f32 %v450, 0.0
  %v553 = vmax.f32 %v452, 0.0
  %v554 = vmax.f32 %v455, 0.0
  %v555 = vmax.f32 %v457, 0.0
  %v556 = vmax.f32 %v460, 0.0
  %v557 = vmax.f32 %v462, 0.0
  %v558 = vmax.f32 %v465, 0.0
  %v559 = vmax.f32 %v467, 0.0
  %v560 = vmax.f32 %v470, 0.0
  %v561 = vmax.f32 %v472, 0.0
  %v562 = vmax.f32 %v475, 0.0
  %v563 = vmax.f32 %v477, 0.0
  %v564 = vmax.f32 %v480, 0.0
  %v565 = vmax.f32 %v482, 0.0
  %v566 = vmax.f32 %v485, 0.0
  %v567 = vmax.f32 %v487, 0.0
  %v568 = vmax.f32 %v490, 0.0
  %v569 = vmax.f32 %v492, 0.0
  %v570 = vmax.f32 %v495, 0.0
  %v571 = vmax.f32 %v497, 0.0
  %v572 = vmax.f32 %v500, 0.0
  %v573 = vmax.f32 %v502, 0.0
  %v574 = vmax.f32 %v505, 0.0
  %v575 = vmax.f32 %v507, 0.0
  %v576 = vmax.f32 %v510, 0.0
  %v577 = vmax.f32 %v512, 0.0
  %v578 = vpack.c.bf16 %v514, %v514
  %v579 = vpack.c.bf16 %v515, %v515
  %v580 = vpack.c.bf16 %v516, %v516
  %v581 = vpack.c.bf16 %v517, %v517
  %v582 = vpack.c.bf16 %v518, %v518
  %v583 = vpack.c.bf16 %v519, %v519
  %v584 = vpack.c.bf16 %v520, %v520
  %v585 = vpack.c.bf16 %v521, %v521
  %v586 = vpack.c.bf16 %v522, %v522
  %v587 = vpack.c.bf16 %v523, %v523
  %v588 = vpack.c.bf16 %v524, %v524
  %v589 = vpack.c.bf16 %v525, %v525
  %v590 = vpack.c.bf16 %v526, %v526
  %v591 = vpack.c.bf16 %v527, %v527
  %v592 = vpack.c.bf16 %v528, %v528
  %v593 = vpack.c.bf16 %v529, %v529
  %v594 = vpack.c.bf16 %v530, %v530
  %v595 = vpack.c.bf16 %v531, %v531
  %v596 = vpack.c.bf16 %v532, %v532
  %v597 = vpack.c.bf16 %v533, %v533
  %v598 = vpack.c.bf16 %v534, %v534
  %v599 = vpack.c.bf16 %v535, %v535
  %v600 = vpack.c.bf16 %v536, %v536
  %v601 = vpack.c.bf16 %v537, %v537
  %v602 = vpack.c.bf16 %v538, %v538
  %v603 = vpack.c.bf16 %v539, %v539
  %v604 = vpack.c.bf16 %v540, %v540
  %v605 = vpack.c.bf16 %v541, %v541
  %v606 = vpack.c.bf16 %v542, %v542
  %v607 = vpack.c.bf16 %v543, %v543
  %v608 = vpack.c.bf16 %v544, %v544
  %v609 = vpack.c.bf16 %v545, %v545
  %v610 = vpack.c.bf16 %v546, %v546
  %v611 = vpack.c.bf16 %v547, %v547
  %v612 = vpack.c.bf16 %v548, %v548
  %v613 = vpack.c.bf16 %v549, %v549
  %v614 = vpack.c.bf16 %v550, %v550
  %v615 = vpack.c.bf16 %v551, %v551
  %v616 = vpack.c.bf16 %v552, %v552
  %v617 = vpack.c.bf16 %v553, %v553
  %v618 = vpack.c.bf16 %v554, %v554
  %v619 = vpack.c.bf16 %v555, %v555
  %v620 = vpack.c.bf16 %v556, %v556
  %v621 = vpack.c.bf16 %v557, %v557
  %v622 = vpack.c.bf16 %v558, %v558
  %v623 = vpack.c.bf16 %v559, %v559
  %v624 = vpack.c.bf16 %v560, %v560
  %v625 = vpack.c.bf16 %v561, %v561
  %v626 = vpack.c.bf16 %v562, %v562
  %v627 = vpack.c.bf16 %v563, %v563
  %v628 = vpack.c.bf16 %v564, %v564
  %v629 = vpack.c.bf16 %v565, %v565
  %v630 = vpack.c.bf16 %v566, %v566
  %v631 = vpack.c.bf16 %v567, %v567
  %v632 = vpack.c.bf16 %v568, %v568
  %v633 = vpack.c.bf16 %v569, %v569
  %v634 = vpack.c.bf16 %v570, %v570
  %v635 = vpack.c.bf16 %v571, %v571
  %v636 = vpack.c.bf16 %v572, %v572
  %v637 = vpack.c.bf16 %v573, %v573
  %v638 = vpack.c.bf16 %v574, %v574
  %v639 = vpack.c.bf16 %v575, %v575
  %v640 = vpack.c.bf16 %v576, %v576
  %v641 = vpack.c.bf16 %v577, %v577
  %vm642 = vcmask 27648
  %643 = vst.msk [vmem:[%s3] sm:$0xf] %vm642, %v578
  %644 = vst.msk [vmem:[%s3 + $0x4] sm:$0xf] %vm642, %v579
  %645 = vst.msk [vmem:[%s3 + $0x8] sm:$0xf] %vm642, %v580
  %646 = vst.msk [vmem:[%s3 + $0xc] sm:$0xf] %vm642, %v581
  %647 = vst.msk [vmem:[%s3 + $0x10] sm:$0xf] %vm642, %v582
  %648 = vst.msk [vmem:[%s3 + $0x14] sm:$0xf] %vm642, %v583
  %649 = vst.msk [vmem:[%s3 + $0x18] sm:$0xf] %vm642, %v584
  %650 = vst.msk [vmem:[%s3 + $0x1c] sm:$0xf] %vm642, %v585
  %651 = vst.msk [vmem:[%s3 + $0x20] sm:$0xf] %vm642, %v586
  %652 = vst.msk [vmem:[%s3 + $0x24] sm:$0xf] %vm642, %v587
  %653 = vst.msk [vmem:[%s3 + $0x28] sm:$0xf] %vm642, %v588
  %654 = vst.msk [vmem:[%s3 + $0x2c] sm:$0xf] %vm642, %v589
  %655 = vst.msk [vmem:[%s3 + $0x30] sm:$0xf] %vm642, %v590
  %656 = vst.msk [vmem:[%s3 + $0x34] sm:$0xf] %vm642, %v591
  %657 = vst.msk [vmem:[%s3 + $0x38] sm:$0xf] %vm642, %v592
  %658 = vst.msk [vmem:[%s3 + $0x3c] sm:$0xf] %vm642, %v593
  %659 = vst.msk [vmem:[%s3 + $0x40] sm:$0xf] %vm642, %v594
  %660 = vst.msk [vmem:[%s3 + $0x44] sm:$0xf] %vm642, %v595
  %661 = vst.msk [vmem:[%s3 + $0x48] sm:$0xf] %vm642, %v596
  %662 = vst.msk [vmem:[%s3 + $0x4c] sm:$0xf] %vm642, %v597
  %663 = vst.msk [vmem:[%s3 + $0x50] sm:$0xf] %vm642, %v598
  %664 = vst.msk [vmem:[%s3 + $0x54] sm:$0xf] %vm642, %v599
  %665 = vst.msk [vmem:[%s3 + $0x58] sm:$0xf] %vm642, %v600
  %666 = vst.msk [vmem:[%s3 + $0x5c] sm:$0xf] %vm642, %v601
  %667 = vst.msk [vmem:[%s3 + $0x60] sm:$0xf] %vm642, %v602
  %668 = vst.msk [vmem:[%s3 + $0x64] sm:$0xf] %vm642, %v603
  %669 = vst.msk [vmem:[%s3 + $0x68] sm:$0xf] %vm642, %v604
  %670 = vst.msk [vmem:[%s3 + $0x6c] sm:$0xf] %vm642, %v605
  %671 = vst.msk [vmem:[%s3 + $0x70] sm:$0xf] %vm642, %v606
  %672 = vst.msk [vmem:[%s3 + $0x74] sm:$0xf] %vm642, %v607
  %673 = vst.msk [vmem:[%s3 + $0x78] sm:$0xf] %vm642, %v608
  %674 = vst.msk [vmem:[%s3 + $0x7c] sm:$0xf] %vm642, %v609
  %675 = vst.msk [vmem:[%s3 + $0x80] sm:$0xf] %vm642, %v610
  %676 = vst.msk [vmem:[%s3 + $0x84] sm:$0xf] %vm642, %v611
  %677 = vst.msk [vmem:[%s3 + $0x88] sm:$0xf] %vm642, %v612
  %678 = vst.msk [vmem:[%s3 + $0x8c] sm:$0xf] %vm642, %v613
  %679 = vst.msk [vmem:[%s3 + $0x90] sm:$0xf] %vm642, %v614
  %680 = vst.msk [vmem:[%s3 + $0x94] sm:$0xf] %vm642, %v615
  %681 = vst.msk [vmem:[%s3 + $0x98] sm:$0xf] %vm642, %v616
  %682 = vst.msk [vmem:[%s3 + $0x9c] sm:$0xf] %vm642, %v617
  %683 = vst.msk [vmem:[%s3 + $0xa0] sm:$0xf] %vm642, %v618
  %684 = vst.msk [vmem:[%s3 + $0xa4] sm:$0xf] %vm642, %v619
  %685 = vst.msk [vmem:[%s3 + $0xa8] sm:$0xf] %vm642, %v620
  %686 = vst.msk [vmem:[%s3 + $0xac] sm:$0xf] %vm642, %v621
  %687 = vst.msk [vmem:[%s3 + $0xb0] sm:$0xf] %vm642, %v622
  %688 = vst.msk [vmem:[%s3 + $0xb4] sm:$0xf] %vm642, %v623
  %689 = vst.msk [vmem:[%s3 + $0xb8] sm:$0xf] %vm642, %v624
  %690 = vst.msk [vmem:[%s3 + $0xbc] sm:$0xf] %vm642, %v625
  %691 = vst.msk [vmem:[%s3 + $0xc0] sm:$0xf] %vm642, %v626
  %692 = vst.msk [vmem:[%s3 + $0xc4] sm:$0xf] %vm642, %v627
  %693 = vst.msk [vmem:[%s3 + $0xc8] sm:$0xf] %vm642, %v628
  %694 = vst.msk [vmem:[%s3 + $0xcc] sm:$0xf] %vm642, %v629
  %695 = vst.msk [vmem:[%s3 + $0xd0] sm:$0xf] %vm642, %v630
  %696 = vst.msk [vmem:[%s3 + $0xd4] sm:$0xf] %vm642, %v631
  %697 = vst.msk [vmem:[%s3 + $0xd8] sm:$0xf] %vm642, %v632
  %698 = vst.msk [vmem:[%s3 + $0xdc] sm:$0xf] %vm642, %v633
  %699 = vst.msk [vmem:[%s3 + $0xe0] sm:$0xf] %vm642, %v634
  %700 = vst.msk [vmem:[%s3 + $0xe4] sm:$0xf] %vm642, %v635
  %701 = vst.msk [vmem:[%s3 + $0xe8] sm:$0xf] %vm642, %v636
  %702 = vst.msk [vmem:[%s3 + $0xec] sm:$0xf] %vm642, %v637
  %703 = vst.msk [vmem:[%s3 + $0xf0] sm:$0xf] %vm642, %v638
  %704 = vst.msk [vmem:[%s3 + $0xf4] sm:$0xf] %vm642, %v639
  %705 = vst.msk [vmem:[%s3 + $0xf8] sm:$0xf] %vm642, %v640
  %706 = vst.msk [vmem:[%s3 + $0xfc] sm:$0xf] %vm642, %v641
  // Predicated region
  $region14: #{bottleneck_psp_forward.2} parent=0 // pred_check
    _
  $region15: #{bottleneck_psp_forward.2} parent=0 // pred_check_branch
    %708 = sbr.rel (0) target = $region17
  $region16: #{bottleneck_psp_forward.2} parent=0 // pred_region
    _
  $region17: #{bottleneck_psp_forward.2} parent=0 // pred_fallthru
    _
  // Predicated region
  $region18: #{bottleneck_psp_forward.2} parent=0 // pred_check
    _
  $region19: #{bottleneck_psp_forward.2} parent=0 // pred_check_branch
    %710 = sbr.rel (0) target = $region21
  $region20: #{bottleneck_psp_forward.2} parent=0 // pred_region
    _
  $region21: #{bottleneck_psp_forward.2} parent=0 // pred_fallthru
    _

// kernel: bottleneck_psp_forward.3
$region0: #{bottleneck_psp_forward.3}
  #allocation0 [shape = 'u32[]', space=smem, size = 0x4, offset = 0x4, fixed_abs, tag = 'smem constant byte address 0x4 - core index']
  #allocation1 [shape = 'u32[72,128]{1,0:T(1,128)}', space=vmem, size = 0x9000, scoped, tag = 'internal scratch']
  %s0 = inlined_call_operand.vmem [shape: bf16[2,4,9,9,4], index: 0, kind: input, shape index: {}]
  %s1 = inlined_call_operand.vmem [shape: bf16[2,8,8,8], index: 1, kind: input, shape index: {}]
  %s2 = inlined_call_operand.vmem [shape: bf16[9,4,4], index: 2, kind: input, shape index: {}]
  %s3 = inlined_call_operand.vmem [shape: f32[1,4], index: 3, kind: input, shape index: {}]
  %s4 = inlined_call_operand.vmem [shape: bf16[4,16], index: 4, kind: input, shape index: {}]
  %s5 = inlined_call_operand.vmem [shape: f32[1,16], index: 5, kind: input, shape index: {}]
  %s6 = inlined_call_operand.vmem [shape: bf16[8,16], index: 6, kind: input, shape index: {}]
  %s7 = inlined_call_operand.vmem [shape: f32[1,16], index: 7, kind: input, shape index: {}]
  %s8 = inlined_call_operand.hbm [shape: f32[2,8,8,16], index: 8, kind: output, shape index: {}]
  %s9 = sld [smem:[#allocation0]]
  $region65: #{bottleneck_psp_forward.3} parent=0
    _
  %s11 = ssub.s32 1, %s9
  %s12 = scalar_select 0, %s11, %s9
  $region1: #{bottleneck_psp_forward.3} parent=0
    #allocation2 [shape = 'u8[65536]{0}', space=vmem, size = 0x10000, scoped, tag = 'output window, operand 0']
    #allocation3 [shape = 's32[2]{0}', space=sflag, size = 0x8, scoped, tag = 'scoped memory for bottleneck_psp_forward.3']
    %13 = vsyncpa [#allocation3], 0
    %s14 = scalar_lea.sflag [#allocation3], 1
    %15 = vsyncpa %s14, 0
    loop: start=0, step=1, limit=4
    $region2: #{bottleneck_psp_forward.3} parent=1 // loop_pre_header
      _
    $region3: #{bottleneck_psp_forward.3} parent=1 // loop_header
      %s17 = sphi 0, %s21
      %p18 = scmp.ge.s32.totalorder %s17, 4
      %s27 = sphi 0, %s29
      %s30 = sphi 0, %s27
      %s31 = sphi 0, %s30
      %s47 = sphi 0, %s31
      %s53 = sphi 0, %s55
      %s56 = sphi 0, %s53
      %s57 = sphi 0, %s56
      %s73 = sphi 0, %s57
      %s77 = sphi 0, %s77
      %s79 = sphi 0, %s77
      %s80 = sphi 0, %s79
      %s94 = sphi 0, %s80
      %s98 = sphi 0, %s98
      %s100 = sphi 0, %s98
      %s101 = sphi 0, %s100
      %s115 = sphi 0, %s101
      %s119 = sphi 0, %s119
      %s121 = sphi 0, %s119
      %s122 = sphi 0, %s121
      %s136 = sphi 0, %s122
      %s140 = sphi 0, %s140
      %s142 = sphi 0, %s140
      %s143 = sphi 0, %s142
      %s157 = sphi 0, %s143
      %s161 = sphi 0, %s161
      %s163 = sphi 0, %s161
      %s164 = sphi 0, %s163
      %s178 = sphi 0, %s164
      %s182 = sphi 0, %s182
      %s184 = sphi 0, %s182
      %s185 = sphi 0, %s184
      %s199 = sphi 0, %s185
      %s205 = sphi 0, %s207
      %s208 = sphi 0, %s205
      %s209 = sphi 0, %s208
      %s225 = sphi 0, %s209
    $region4: #{bottleneck_psp_forward.3} parent=1 // loop_header_branch
      %20 = sbr.rel (%p18) target = $region8
    $region5: #{bottleneck_psp_forward.3} parent=1 // loop_body
      %s22 = ssub.s32 %s17, 1
      %s23 = ssub.s32 %s17, 2
      %s24 = sadd.s32 %s17, 1
      %s25 = ssub.s32 %s17, %s24
      %p26 = scmp.eq.s32.totalorder %s25, 0
      %s28 = sadd.s32 %s27, 1
      %s29 = scalar_select %p26, %s27, %s28
      %p32 = pneg %p26
      %p33 = scmp.eq.s32.totalorder %s17, 1
      %p34 = por %p32, %p33
      %p35 = scmp.ne.s32.totalorder %s27, %s30
      %p36 = scmp.eq.s32.totalorder %s17, 0
      %p37 = por %p35, %p36
      %p38 = scmp.ne.s32.totalorder %s27, %s30
      %p39 = scmp.eq.s32.totalorder %s22, 1
      %p40 = por %p38, %p39
      %p41 = scmp.ne.s32.totalorder %s30, %s31
      %p42 = scmp.eq.s32.totalorder %s22, 0
      %p43 = por %p41, %p42
      %p44 = scmp.ne.s32.totalorder %s30, %s31
      %p45 = scmp.eq.s32.totalorder %s23, 1
      %p46 = por %p44, %p45
      %p48 = scmp.ne.s32.totalorder %s31, %s47
      %p49 = scmp.eq.s32.totalorder %s23, 0
      %p50 = por %p48, %p49
      %s51 = ssub.s32 %s17, %s24
      %p52 = scmp.eq.s32.totalorder %s51, 0
      %s54 = sadd.s32 %s53, 1
      %s55 = scalar_select %p52, %s53, %s54
      %p58 = pneg %p52
      %p59 = scmp.eq.s32.totalorder %s17, 1
      %p60 = por %p58, %p59
      %p61 = scmp.ne.s32.totalorder %s53, %s56
      %p62 = scmp.eq.s32.totalorder %s17, 0
      %p63 = por %p61, %p62
      %p64 = scmp.ne.s32.totalorder %s53, %s56
      %p65 = scmp.eq.s32.totalorder %s22, 1
      %p66 = por %p64, %p65
      %p67 = scmp.ne.s32.totalorder %s56, %s57
      %p68 = scmp.eq.s32.totalorder %s22, 0
      %p69 = por %p67, %p68
      %p70 = scmp.ne.s32.totalorder %s56, %s57
      %p71 = scmp.eq.s32.totalorder %s23, 1
      %p72 = por %p70, %p71
      %p74 = scmp.ne.s32.totalorder %s57, %s73
      %p75 = scmp.eq.s32.totalorder %s23, 0
      %p76 = por %p74, %p75
      %s78 = sadd.s32 %s77, 1
      %p81 = scmp.eq.s32.totalorder %s17, 1
      %p82 = scmp.ne.s32.totalorder %s77, %s79
      %p83 = scmp.eq.s32.totalorder %s17, 0
      %p84 = por %p82, %p83
      %p85 = scmp.ne.s32.totalorder %s77, %s79
      %p86 = scmp.eq.s32.totalorder %s22, 1
      %p87 = por %p85, %p86
      %p88 = scmp.ne.s32.totalorder %s79, %s80
      %p89 = scmp.eq.s32.totalorder %s22, 0
      %p90 = por %p88, %p89
      %p91 = scmp.ne.s32.totalorder %s79, %s80
      %p92 = scmp.eq.s32.totalorder %s23, 1
      %p93 = por %p91, %p92
      %p95 = scmp.ne.s32.totalorder %s80, %s94
      %p96 = scmp.eq.s32.totalorder %s23, 0
      %p97 = por %p95, %p96
      %s99 = sadd.s32 %s98, 1
      %p102 = scmp.eq.s32.totalorder %s17, 1
      %p103 = scmp.ne.s32.totalorder %s98, %s100
      %p104 = scmp.eq.s32.totalorder %s17, 0
      %p105 = por %p103, %p104
      %p106 = scmp.ne.s32.totalorder %s98, %s100
      %p107 = scmp.eq.s32.totalorder %s22, 1
      %p108 = por %p106, %p107
      %p109 = scmp.ne.s32.totalorder %s100, %s101
      %p110 = scmp.eq.s32.totalorder %s22, 0
      %p111 = por %p109, %p110
      %p112 = scmp.ne.s32.totalorder %s100, %s101
      %p113 = scmp.eq.s32.totalorder %s23, 1
      %p114 = por %p112, %p113
      %p116 = scmp.ne.s32.totalorder %s101, %s115
      %p117 = scmp.eq.s32.totalorder %s23, 0
      %p118 = por %p116, %p117
      %s120 = sadd.s32 %s119, 1
      %p123 = scmp.eq.s32.totalorder %s17, 1
      %p124 = scmp.ne.s32.totalorder %s119, %s121
      %p125 = scmp.eq.s32.totalorder %s17, 0
      %p126 = por %p124, %p125
      %p127 = scmp.ne.s32.totalorder %s119, %s121
      %p128 = scmp.eq.s32.totalorder %s22, 1
      %p129 = por %p127, %p128
      %p130 = scmp.ne.s32.totalorder %s121, %s122
      %p131 = scmp.eq.s32.totalorder %s22, 0
      %p132 = por %p130, %p131
      %p133 = scmp.ne.s32.totalorder %s121, %s122
      %p134 = scmp.eq.s32.totalorder %s23, 1
      %p135 = por %p133, %p134
      %p137 = scmp.ne.s32.totalorder %s122, %s136
      %p138 = scmp.eq.s32.totalorder %s23, 0
      %p139 = por %p137, %p138
      %s141 = sadd.s32 %s140, 1
      %p144 = scmp.eq.s32.totalorder %s17, 1
      %p145 = scmp.ne.s32.totalorder %s140, %s142
      %p146 = scmp.eq.s32.totalorder %s17, 0
      %p147 = por %p145, %p146
      %p148 = scmp.ne.s32.totalorder %s140, %s142
      %p149 = scmp.eq.s32.totalorder %s22, 1
      %p150 = por %p148, %p149
      %p151 = scmp.ne.s32.totalorder %s142, %s143
      %p152 = scmp.eq.s32.totalorder %s22, 0
      %p153 = por %p151, %p152
      %p154 = scmp.ne.s32.totalorder %s142, %s143
      %p155 = scmp.eq.s32.totalorder %s23, 1
      %p156 = por %p154, %p155
      %p158 = scmp.ne.s32.totalorder %s143, %s157
      %p159 = scmp.eq.s32.totalorder %s23, 0
      %p160 = por %p158, %p159
      %s162 = sadd.s32 %s161, 1
      %p165 = scmp.eq.s32.totalorder %s17, 1
      %p166 = scmp.ne.s32.totalorder %s161, %s163
      %p167 = scmp.eq.s32.totalorder %s17, 0
      %p168 = por %p166, %p167
      %p169 = scmp.ne.s32.totalorder %s161, %s163
      %p170 = scmp.eq.s32.totalorder %s22, 1
      %p171 = por %p169, %p170
      %p172 = scmp.ne.s32.totalorder %s163, %s164
      %p173 = scmp.eq.s32.totalorder %s22, 0
      %p174 = por %p172, %p173
      %p175 = scmp.ne.s32.totalorder %s163, %s164
      %p176 = scmp.eq.s32.totalorder %s23, 1
      %p177 = por %p175, %p176
      %p179 = scmp.ne.s32.totalorder %s164, %s178
      %p180 = scmp.eq.s32.totalorder %s23, 0
      %p181 = por %p179, %p180
      %s183 = sadd.s32 %s182, 1
      %p186 = scmp.eq.s32.totalorder %s17, 1
      %p187 = scmp.ne.s32.totalorder %s182, %s184
      %p188 = scmp.eq.s32.totalorder %s17, 0
      %p189 = por %p187, %p188
      %p190 = scmp.ne.s32.totalorder %s182, %s184
      %p191 = scmp.eq.s32.totalorder %s22, 1
      %p192 = por %p190, %p191
      %p193 = scmp.ne.s32.totalorder %s184, %s185
      %p194 = scmp.eq.s32.totalorder %s22, 0
      %p195 = por %p193, %p194
      %p196 = scmp.ne.s32.totalorder %s184, %s185
      %p197 = scmp.eq.s32.totalorder %s23, 1
      %p198 = por %p196, %p197
      %p200 = scmp.ne.s32.totalorder %s185, %s199
      %p201 = scmp.eq.s32.totalorder %s23, 0
      %p202 = por %p200, %p201
      %s203 = ssub.s32 %s17, %s24
      %p204 = scmp.eq.s32.totalorder %s203, 0
      %s206 = sadd.s32 %s205, 1
      %s207 = scalar_select %p204, %s205, %s206
      %p210 = pneg %p204
      %p211 = scmp.eq.s32.totalorder %s17, 1
      %p212 = por %p210, %p211
      %p213 = scmp.ne.s32.totalorder %s205, %s208
      %p214 = scmp.eq.s32.totalorder %s17, 0
      %p215 = por %p213, %p214
      %p216 = scmp.ne.s32.totalorder %s205, %s208
      %p217 = scmp.eq.s32.totalorder %s22, 1
      %p218 = por %p216, %p217
      %p219 = scmp.ne.s32.totalorder %s208, %s209
      %p220 = scmp.eq.s32.totalorder %s22, 0
      %p221 = por %p219, %p220
      %p222 = scmp.ne.s32.totalorder %s208, %s209
      %p223 = scmp.eq.s32.totalorder %s23, 1
      %p224 = por %p222, %p223
      %p226 = scmp.ne.s32.totalorder %s209, %s225
      %p227 = scmp.eq.s32.totalorder %s23, 0
      %p228 = por %p226, %p227
      %p229 = scmp.le.s32.totalorder 1, %s17
      %p230 = scmp.lt.s32.totalorder %s17, 3
      %p231 = pnand %p229, %p230
      %p232 = pneg %p231
      // Predicated region
      $region9: #{bottleneck_psp_forward.3} parent=5 // pred_check
        _
      $region10: #{bottleneck_psp_forward.3} parent=5 // pred_check_branch
        %234 = sbr.rel (%p231) target = $region12
      $region11: #{bottleneck_psp_forward.3} parent=5 // pred_region
        %s235 = ssub.s32 %s17, 1
        // Predicated region
        $region13: #{bottleneck_psp_forward.3} parent=11 // pred_check
          %p236 = pneg %p90
        $region14: #{bottleneck_psp_forward.3} parent=11 // pred_check_branch
          %238 = sbr.rel (%p236) target = $region16
        $region15: #{bottleneck_psp_forward.3} parent=11 // pred_region
          _
        $region16: #{bottleneck_psp_forward.3} parent=11 // pred_fallthru
          _
        // Predicated region
        $region17: #{bottleneck_psp_forward.3} parent=11 // pred_check
          %p239 = pneg %p111
        $region18: #{bottleneck_psp_forward.3} parent=11 // pred_check_branch
          %241 = sbr.rel (%p239) target = $region20
        $region19: #{bottleneck_psp_forward.3} parent=11 // pred_region
          _
        $region20: #{bottleneck_psp_forward.3} parent=11 // pred_fallthru
          _
        // Predicated region
        $region21: #{bottleneck_psp_forward.3} parent=11 // pred_check
          %p242 = pneg %p132
        $region22: #{bottleneck_psp_forward.3} parent=11 // pred_check_branch
          %244 = sbr.rel (%p242) target = $region24
        $region23: #{bottleneck_psp_forward.3} parent=11 // pred_region
          _
        $region24: #{bottleneck_psp_forward.3} parent=11 // pred_fallthru
          _
        // Predicated region
        $region25: #{bottleneck_psp_forward.3} parent=11 // pred_check
          %p245 = pneg %p153
        $region26: #{bottleneck_psp_forward.3} parent=11 // pred_check_branch
          %247 = sbr.rel (%p245) target = $region28
        $region27: #{bottleneck_psp_forward.3} parent=11 // pred_region
          _
        $region28: #{bottleneck_psp_forward.3} parent=11 // pred_fallthru
          _
        // Predicated region
        $region29: #{bottleneck_psp_forward.3} parent=11 // pred_check
          %p248 = pneg %p174
        $region30: #{bottleneck_psp_forward.3} parent=11 // pred_check_branch
          %250 = sbr.rel (%p248) target = $region32
        $region31: #{bottleneck_psp_forward.3} parent=11 // pred_region
          _
        $region32: #{bottleneck_psp_forward.3} parent=11 // pred_fallthru
          _
        // Predicated region
        $region33: #{bottleneck_psp_forward.3} parent=11 // pred_check
          %p251 = pneg %p195
        $region34: #{bottleneck_psp_forward.3} parent=11 // pred_check_branch
          %253 = sbr.rel (%p251) target = $region36
        $region35: #{bottleneck_psp_forward.3} parent=11 // pred_region
          _
        $region36: #{bottleneck_psp_forward.3} parent=11 // pred_fallthru
          _
      $region12: #{bottleneck_psp_forward.3} parent=5 // pred_fallthru
        _
      %p254 = scmp.lt.s32.totalorder %s17, 2
      // Predicated region
      $region37: #{bottleneck_psp_forward.3} parent=5 // pred_check
        %p255 = pneg %p254
      $region38: #{bottleneck_psp_forward.3} parent=5 // pred_check_branch
        %257 = sbr.rel (%p255) target = $region40
      $region39: #{bottleneck_psp_forward.3} parent=5 // pred_region
        // Predicated region
        $region41: #{bottleneck_psp_forward.3} parent=39 // pred_check
          %p258 = pneg %p37
        $region42: #{bottleneck_psp_forward.3} parent=39 // pred_check_branch
          %260 = sbr.rel (%p258) target = $region44
        $region43: #{bottleneck_psp_forward.3} parent=39 // pred_region
          %p261 = scmp.lt.s32.totalorder %s17, 1
          %s262 = scalar_select %p261, %s17, 1
          %s263 = smul.addr %s262, 72
          %s264 = smul.addr %s263, 4
          %s265 = scalar_lea.vmem %s0, %s264
        $region44: #{bottleneck_psp_forward.3} parent=39 // pred_fallthru
          _
        // Predicated region
        $region45: #{bottleneck_psp_forward.3} parent=39 // pred_check
          %p266 = pneg %p63
        $region46: #{bottleneck_psp_forward.3} parent=39 // pred_check_branch
          %268 = sbr.rel (%p266) target = $region48
        $region47: #{bottleneck_psp_forward.3} parent=39 // pred_region
          %p269 = scmp.lt.s32.totalorder %s17, 1
          %s270 = scalar_select %p269, %s17, 1
          %s271 = smul.addr %s270, 8
          %s272 = smul.addr %s271, 4
          %s273 = scalar_lea.vmem %s1, %s272
        $region48: #{bottleneck_psp_forward.3} parent=39 // pred_fallthru
          _
      $region40: #{bottleneck_psp_forward.3} parent=5 // pred_fallthru
        _
      %p274 = scmp.le.s32.totalorder 1, %s17
      %p275 = scmp.lt.s32.totalorder %s17, 3
      %p276 = pnand %p274, %p275
      %p277 = pneg %p276
      // Predicated region
      $region49: #{bottleneck_psp_forward.3} parent=5 // pred_check
        _
      $region50: #{bottleneck_psp_forward.3} parent=5 // pred_check_branch
        %279 = sbr.rel (%p276) target = $region52
      $region51: #{bottleneck_psp_forward.3} parent=5 // pred_region
        %s280 = ssub.s32 %s17, 1
        %p281 = scmp.lt.s32.totalorder %s22, 1
        %s282 = scalar_select %p281, %s22, 1
        %s283 = smul.addr %s282, 72
        %s284 = smul.addr %s283, 4
        %s285 = scalar_lea.vmem %s0, %s284
        %p286 = pneg %p43
        %p287 = pneg %p40
        %p288 = scmp.lt.s32.totalorder %s22, 1
        %s289 = scalar_select %p288, %s22, 1
        %s290 = smul.addr %s289, 8
        %s291 = smul.addr %s290, 4
        %s292 = scalar_lea.vmem %s1, %s291
        %p293 = pneg %p69
        %p294 = pneg %p66
        %p295 = pneg %p90
        %p296 = pneg %p87
        %p297 = pneg %p111
        %p298 = pneg %p108
        %p299 = pneg %p132
        %p300 = pneg %p129
        %p301 = pneg %p153
        %p302 = pneg %p150
        %p303 = pneg %p174
        %p304 = pneg %p171
        %p305 = pneg %p195
        %p306 = pneg %p192
        %p307 = pneg %p221
        %p308 = pneg %p218
        %s309 = sand.u32 %s208, 1
        %s310 = scalar_lea.sflag [#allocation3], %s309
        %s311 = sand.u32 %s208, 1
        %s312 = smul.addr %s311, 64
        %s313 = scalar_lea.vmem [#allocation2], %s312
        %p314 = scmp.lt.s32.totalorder %s22, 1
        %s315 = scalar_select %p314, %s22, 1
        %s316 = smul.addr %s315, 72
        %s317 = smul.addr %s316, 4
        %s318 = scalar_lea.vmem %s0, %s317
        %p319 = scmp.lt.s32.totalorder %s22, 1
        %s320 = scalar_select %p319, %s22, 1
        %s321 = smul.addr %s320, 8
        %s322 = smul.addr %s321, 4
        %s323 = scalar_lea.vmem %s1, %s322
        %v325 = vld [vmem:[%s318] sm:$0xf]
        %v326 = vld [vmem:[%s318 + $0x8] sm:$0xf]
        %v327 = vld [vmem:[%s318 + $0x10] sm:$0xf]
        %v328 = vld [vmem:[%s318 + $0x18] sm:$0xf]
        %v329 = vld [vmem:[%s318 + $0x20] sm:$0xf]
        %v330 = vld [vmem:[%s318 + $0x28] sm:$0xf]
        %v331 = vld [vmem:[%s318 + $0x30] sm:$0xf]
        %v332 = vld [vmem:[%s318 + $0x38] sm:$0xf]
        %v333 = vld [vmem:[%s2] sm:$0x3]
        %s334 = scalar_lea.vmem %s318, 72
        %v335 = vld [vmem:[%s334] sm:$0xf]
        %v336 = vld [vmem:[%s334 + $0x8] sm:$0xf]
        %v337 = vld [vmem:[%s334 + $0x10] sm:$0xf]
        %v338 = vld [vmem:[%s334 + $0x18] sm:$0xf]
        %v339 = vld [vmem:[%s334 + $0x20] sm:$0xf]
        %v340 = vld [vmem:[%s334 + $0x28] sm:$0xf]
        %v341 = vld [vmem:[%s334 + $0x30] sm:$0xf]
        %v342 = vld [vmem:[%s334 + $0x38] sm:$0xf]
        %s343 = scalar_lea.vmem %s2, 2
        %v344 = vld [vmem:[%s343] sm:$0x3]
        %v353 = vunpack.c.l.b16 %v335
        %v354 = vunpack.c.l.b16 %v336
        %v355 = vunpack.c.l.b16 %v337
        %v356 = vunpack.c.l.b16 %v338
        %v357 = vunpack.c.l.b16 %v339
        %v358 = vunpack.c.l.b16 %v340
        %v359 = vunpack.c.l.b16 %v341
        %v360 = vunpack.c.l.b16 %v342
        %v361 = vpack.c.b16 %v354, %v353
        %v362 = vpack.c.b16 %v356, %v355
        %v363 = vpack.c.b16 %v358, %v357
        %v364 = vpack.c.b16 %v360, %v359
        %vm365 = vcmask 31744
        %v367 = vsel %vm365, %v361, 0
        %v370 = vsel %vm365, %v362, 0
        %v373 = vsel %vm365, %v363, 0
        %v376 = vsel %vm365, %v364, 0
        %vm378 = vcmask 1041408
        %v380 = vsel %vm378, %v344, 0
        %382 = vmatpush.bf16.msra.mxu0 0
        %383 = vmatpush.bf16.msra.mxu0 0
        %384 = vmatpush.bf16.msra.mxu0 0
        %385 = vmatpush.bf16.msra.mxu0 0
        %386 = vmatpush.bf16.msra.mxu0 0
        %387 = vmatpush.bf16.msra.mxu0 0
        %388 = vmatpush.bf16.msra.mxu0 0
        %389 = vmatpush.bf16.msra.mxu0 %v380
        %390 = vmatmul.bf16.gmra.mxu0 %v367
        %v391 = vpop.f32.mrf.mxu0
        %v392 = vadd.f32 0.0, %v391
        %v393 = vpop.f32.mrf.mxu0
        %v394 = vadd.f32 0.0, %v393
        %395 = vmatmul.bf16.gmra.mxu0 %v370
        %v396 = vpop.f32.mrf.mxu0
        %v397 = vadd.f32 0.0, %v396
        %v398 = vpop.f32.mrf.mxu0
        %v399 = vadd.f32 0.0, %v398
        %400 = vmatmul.bf16.gmra.mxu0 %v373
        %v401 = vpop.f32.mrf.mxu0
        %v402 = vadd.f32 0.0, %v401
        %v403 = vpop.f32.mrf.mxu0
        %v404 = vadd.f32 0.0, %v403
        %405 = vmatmul.bf16.gmra.mxu0 %v376
        %v406 = vpop.f32.mrf.mxu0
        %v407 = vadd.f32 0.0, %v406
        %v408 = vpop.f32.mrf.mxu0
        %v409 = vadd.f32 0.0, %v408
        %410 = vdwg.mxu0
        %v419 = vunpack.c.l.b16 %v325
        %v420 = vunpack.c.l.b16 %v326
        %v421 = vunpack.c.l.b16 %v327
        %v422 = vunpack.c.l.b16 %v328
        %v423 = vunpack.c.l.b16 %v329
        %v424 = vunpack.c.l.b16 %v330
        %v425 = vunpack.c.l.b16 %v331
        %v426 = vunpack.c.l.b16 %v332
        %v427 = vpack.c.b16 %v420, %v419
        %v428 = vpack.c.b16 %v422, %v421
        %v429 = vpack.c.b16 %v424, %v423
        %v430 = vpack.c.b16 %v426, %v425
        %v432 = vsel %vm365, %v427, 0
        %v435 = vsel %vm365, %v428, 0
        %v438 = vsel %vm365, %v429, 0
        %v441 = vsel %vm365, %v430, 0
        %v444 = vsel %vm378, %v333, 0
        %446 = vmatpush.bf16.msra.mxu0 0
        %447 = vmatpush.bf16.msra.mxu0 0
        %448 = vmatpush.bf16.msra.mxu0 0
        %449 = vmatpush.bf16.msra.mxu0 0
        %450 = vmatpush.bf16.msra.mxu0 0
        %451 = vmatpush.bf16.msra.mxu0 0
        %452 = vmatpush.bf16.msra.mxu0 0
        %453 = vmatpush.bf16.msra.mxu0 %v444
        %454 = vmatmul.bf16.gmra.mxu0 %v432
        %v455 = vpop.f32.mrf.mxu0
        %v456 = vadd.f32 %v392, %v455
        %v457 = vpop.f32.mrf.mxu0
        %v458 = vadd.f32 %v394, %v457
        %459 = vmatmul.bf16.gmra.mxu0 %v435
        %v460 = vpop.f32.mrf.mxu0
        %v461 = vadd.f32 %v397, %v460
        %v462 = vpop.f32.mrf.mxu0
        %v463 = vadd.f32 %v399, %v462
        %464 = vmatmul.bf16.gmra.mxu0 %v438
        %v465 = vpop.f32.mrf.mxu0
        %v466 = vadd.f32 %v402, %v465
        %v467 = vpop.f32.mrf.mxu0
        %v468 = vadd.f32 %v404, %v467
        %469 = vmatmul.bf16.gmra.mxu0 %v441
        %v470 = vpop.f32.mrf.mxu0
        %v471 = vadd.f32 %v407, %v470
        %v472 = vpop.f32.mrf.mxu0
        %v473 = vadd.f32 %v409, %v472
        %474 = vdwg.mxu0
        %v475 = vld [vmem:[%s318] sm:$0xf]
        %v476 = vld [vmem:[%s318 + $0x4] sm:$0x1]
        %v477 = vld [vmem:[%s318 + $0x8] sm:$0xf]
        %v478 = vld [vmem:[%s318 + $0xc] sm:$0x1]
        %v479 = vld [vmem:[%s318 + $0x10] sm:$0xf]
        %v480 = vld [vmem:[%s318 + $0x14] sm:$0x1]
        %v481 = vld [vmem:[%s318 + $0x18] sm:$0xf]
        %v482 = vld [vmem:[%s318 + $0x1c] sm:$0x1]
        %v483 = vld [vmem:[%s318 + $0x20] sm:$0xf]
        %v484 = vld [vmem:[%s318 + $0x24] sm:$0x1]
        %v485 = vld [vmem:[%s318 + $0x28] sm:$0xf]
        %v486 = vld [vmem:[%s318 + $0x2c] sm:$0x1]
        %v487 = vld [vmem:[%s318 + $0x30] sm:$0xf]
        %v488 = vld [vmem:[%s318 + $0x34] sm:$0x1]
        %v489 = vld [vmem:[%s318 + $0x38] sm:$0xf]
        %v490 = vld [vmem:[%s318 + $0x3c] sm:$0x1]
        %vm491 = vsmask.f32 3328
        %vm492 = vsmask.f32 7440
        %vm493 = vmor %vm491, %vm492
        %v495 = vshrl.u32 %v475, 16
        %v497 = vrot.slane %v495, 4
        %v498 = vshll.u32 %v475, 16
        %v500 = vrot.slane %v498, 5
        %v501 = vor.u32 %v497, %v500
        %v502 = vrot.slane %v501, 4
        %v504 = vshll.u32 %v476, 16
        %v506 = vrot.slane %v504, 5
        %v507 = vsel %vm493, %v502, %v506
        %v509 = vshrl.u32 %v477, 16
        %v511 = vrot.slane %v509, 4
        %v512 = vshll.u32 %v477, 16
        %v514 = vrot.slane %v512, 5
        %v515 = vor.u32 %v511, %v514
        %v516 = vrot.slane %v515, 4
        %v518 = vshll.u32 %v478, 16
        %v520 = vrot.slane %v518, 5
        %v521 = vsel %vm493, %v516, %v520
        %v523 = vshrl.u32 %v479, 16
        %v525 = vrot.slane %v523, 4
        %v526 = vshll.u32 %v479, 16
        %v528 = vrot.slane %v526, 5
        %v529 = vor.u32 %v525, %v528
        %v530 = vrot.slane %v529, 4
        %v532 = vshll.u32 %v480, 16
        %v534 = vrot.slane %v532, 5
        %v535 = vsel %vm493, %v530, %v534
        %v537 = vshrl.u32 %v481, 16
        %v539 = vrot.slane %v537, 4
        %v540 = vshll.u32 %v481, 16
        %v542 = vrot.slane %v540, 5
        %v543 = vor.u32 %v539, %v542
        %v544 = vrot.slane %v543, 4
        %v546 = vshll.u32 %v482, 16
        %v548 = vrot.slane %v546, 5
        %v549 = vsel %vm493, %v544, %v548
        %v551 = vshrl.u32 %v483, 16
        %v553 = vrot.slane %v551, 4
        %v554 = vshll.u32 %v483, 16
        %v556 = vrot.slane %v554, 5
        %v557 = vor.u32 %v553, %v556
        %v558 = vrot.slane %v557, 4
        %v560 = vshll.u32 %v484, 16
        %v562 = vrot.slane %v560, 5
        %v563 = vsel %vm493, %v558, %v562
        %v565 = vshrl.u32 %v485, 16
        %v567 = vrot.slane %v565, 4
        %v568 = vshll.u32 %v485, 16
        %v570 = vrot.slane %v568, 5
        %v571 = vor.u32 %v567, %v570
        %v572 = vrot.slane %v571, 4
        %v574 = vshll.u32 %v486, 16
        %v576 = vrot.slane %v574, 5
        %v577 = vsel %vm493, %v572, %v576
        %v579 = vshrl.u32 %v487, 16
        %v581 = vrot.slane %v579, 4
        %v582 = vshll.u32 %v487, 16
        %v584 = vrot.slane %v582, 5
        %v585 = vor.u32 %v581, %v584
        %v586 = vrot.slane %v585, 4
        %v588 = vshll.u32 %v488, 16
        %v590 = vrot.slane %v588, 5
        %v591 = vsel %vm493, %v586, %v590
        %v593 = vshrl.u32 %v489, 16
        %v595 = vrot.slane %v593, 4
        %v596 = vshll.u32 %v489, 16
        %v598 = vrot.slane %v596, 5
        %v599 = vor.u32 %v595, %v598
        %v600 = vrot.slane %v599, 4
        %v602 = vshll.u32 %v490, 16
        %v604 = vrot.slane %v602, 5
        %v605 = vsel %vm493, %v600, %v604
        %s606 = scalar_lea.vmem %s2, 4
        %v607 = vld [vmem:[%s606] sm:$0x3]
        %v608 = vunpack.c.l.b16 %v507
        %v609 = vunpack.c.l.b16 %v521
        %v610 = vunpack.c.l.b16 %v535
        %v611 = vunpack.c.l.b16 %v549
        %v612 = vunpack.c.l.b16 %v563
        %v613 = vunpack.c.l.b16 %v577
        %v614 = vunpack.c.l.b16 %v591
        %v615 = vunpack.c.l.b16 %v605
        %v616 = vpack.c.b16 %v609, %v608
        %v617 = vpack.c.b16 %v611, %v610
        %v618 = vpack.c.b16 %v613, %v612
        %v619 = vpack.c.b16 %v615, %v614
        %v621 = vsel %vm365, %v616, 0
        %v624 = vsel %vm365, %v617, 0
        %v627 = vsel %vm365, %v618, 0
        %v630 = vsel %vm365, %v619, 0
        %v633 = vsel %vm378, %v607, 0
        %635 = vmatpush.bf16.msra.mxu0 0
        %636 = vmatpush.bf16.msra.mxu0 0
        %637 = vmatpush.bf16.msra.mxu0 0
        %638 = vmatpush.bf16.msra.mxu0 0
        %639 = vmatpush.bf16.msra.mxu0 0
        %640 = vmatpush.bf16.msra.mxu0 0
        %641 = vmatpush.bf16.msra.mxu0 0
        %642 = vmatpush.bf16.msra.mxu0 %v633
        %643 = vmatmul.bf16.gmra.mxu0 %v621
        %v644 = vpop.f32.mrf.mxu0
        %v645 = vadd.f32 0.0, %v644
        %v646 = vpop.f32.mrf.mxu0
        %v647 = vadd.f32 0.0, %v646
        %648 = vmatmul.bf16.gmra.mxu0 %v624
        %v649 = vpop.f32.mrf.mxu0
        %v650 = vadd.f32 0.0, %v649
        %v651 = vpop.f32.mrf.mxu0
        %v652 = vadd.f32 0.0, %v651
        %653 = vmatmul.bf16.gmra.mxu0 %v627
        %v654 = vpop.f32.mrf.mxu0
        %v655 = vadd.f32 0.0, %v654
        %v656 = vpop.f32.mrf.mxu0
        %v657 = vadd.f32 0.0, %v656
        %658 = vmatmul.bf16.gmra.mxu0 %v630
        %v659 = vpop.f32.mrf.mxu0
        %v660 = vadd.f32 0.0, %v659
        %v661 = vpop.f32.mrf.mxu0
        %v662 = vadd.f32 0.0, %v661
        %663 = vdwg.mxu0
        %v664 = vadd.f32 %v456, %v645
        %v665 = vadd.f32 %v458, %v647
        %v666 = vadd.f32 %v461, %v650
        %v667 = vadd.f32 %v463, %v652
        %v668 = vadd.f32 %v466, %v655
        %v669 = vadd.f32 %v468, %v657
        %v670 = vadd.f32 %v471, %v660
        %v671 = vadd.f32 %v473, %v662
        %s672 = scalar_lea.vmem %s318, 144
        %v673 = vld [vmem:[%s672] sm:$0xf]
        %v674 = vld [vmem:[%s672 + $0x8] sm:$0xf]
        %v675 = vld [vmem:[%s672 + $0x10] sm:$0xf]
        %v676 = vld [vmem:[%s672 + $0x18] sm:$0xf]
        %v677 = vld [vmem:[%s672 + $0x20] sm:$0xf]
        %v678 = vld [vmem:[%s672 + $0x28] sm:$0xf]
        %v679 = vld [vmem:[%s672 + $0x30] sm:$0xf]
        %v680 = vld [vmem:[%s672 + $0x38] sm:$0xf]
        %s681 = scalar_lea.vmem %s2, 6
        %v682 = vld [vmem:[%s681] sm:$0x3]
        %v691 = vunpack.c.l.b16 %v673
        %v692 = vunpack.c.l.b16 %v674
        %v693 = vunpack.c.l.b16 %v675
        %v694 = vunpack.c.l.b16 %v676
        %v695 = vunpack.c.l.b16 %v677
        %v696 = vunpack.c.l.b16 %v678
        %v697 = vunpack.c.l.b16 %v679
        %v698 = vunpack.c.l.b16 %v680
        %v699 = vpack.c.b16 %v692, %v691
        %v700 = vpack.c.b16 %v694, %v693
        %v701 = vpack.c.b16 %v696, %v695
        %v702 = vpack.c.b16 %v698, %v697
        %v704 = vsel %vm365, %v699, 0
        %v707 = vsel %vm365, %v700, 0
        %v710 = vsel %vm365, %v701, 0
        %v713 = vsel %vm365, %v702, 0
        %v716 = vsel %vm378, %v682, 0
        %718 = vmatpush.bf16.msra.mxu0 0
        %719 = vmatpush.bf16.msra.mxu0 0
        %720 = vmatpush.bf16.msra.mxu0 0
        %721 = vmatpush.bf16.msra.mxu0 0
        %722 = vmatpush.bf16.msra.mxu0 0
        %723 = vmatpush.bf16.msra.mxu0 0
        %724 = vmatpush.bf16.msra.mxu0 0
        %725 = vmatpush.bf16.msra.mxu0 %v716
        %726 = vmatmul.bf16.gmra.mxu0 %v704
        %v727 = vpop.f32.mrf.mxu0
        %v728 = vadd.f32 0.0, %v727
        %v729 = vpop.f32.mrf.mxu0
        %v730 = vadd.f32 0.0, %v729
        %731 = vmatmul.bf16.gmra.mxu0 %v707
        %v732 = vpop.f32.mrf.mxu0
        %v733 = vadd.f32 0.0, %v732
        %v734 = vpop.f32.mrf.mxu0
        %v735 = vadd.f32 0.0, %v734
        %736 = vmatmul.bf16.gmra.mxu0 %v710
        %v737 = vpop.f32.mrf.mxu0
        %v738 = vadd.f32 0.0, %v737
        %v739 = vpop.f32.mrf.mxu0
        %v740 = vadd.f32 0.0, %v739
        %741 = vmatmul.bf16.gmra.mxu0 %v713
        %v742 = vpop.f32.mrf.mxu0
        %v743 = vadd.f32 0.0, %v742
        %v744 = vpop.f32.mrf.mxu0
        %v745 = vadd.f32 0.0, %v744
        %746 = vdwg.mxu0
        %v747 = vadd.f32 %v664, %v728
        %v748 = vadd.f32 %v665, %v730
        %v749 = vadd.f32 %v666, %v733
        %v750 = vadd.f32 %v667, %v735
        %v751 = vadd.f32 %v668, %v738
        %v752 = vadd.f32 %v669, %v740
        %v753 = vadd.f32 %v670, %v743
        %v754 = vadd.f32 %v671, %v745
        %s755 = scalar_lea.vmem %s318, 216
        %v756 = vld [vmem:[%s755] sm:$0xf]
        %v757 = vld [vmem:[%s755 + $0x8] sm:$0xf]
        %v758 = vld [vmem:[%s755 + $0x10] sm:$0xf]
        %v759 = vld [vmem:[%s755 + $0x18] sm:$0xf]
        %v760 = vld [vmem:[%s755 + $0x20] sm:$0xf]
        %v761 = vld [vmem:[%s755 + $0x28] sm:$0xf]
        %v762 = vld [vmem:[%s755 + $0x30] sm:$0xf]
        %v763 = vld [vmem:[%s755 + $0x38] sm:$0xf]
        %s764 = scalar_lea.vmem %s2, 8
        %v765 = vld [vmem:[%s764] sm:$0x3]
        %v774 = vunpack.c.l.b16 %v756
        %v775 = vunpack.c.l.b16 %v757
        %v776 = vunpack.c.l.b16 %v758
        %v777 = vunpack.c.l.b16 %v759
        %v778 = vunpack.c.l.b16 %v760
        %v779 = vunpack.c.l.b16 %v761
        %v780 = vunpack.c.l.b16 %v762
        %v781 = vunpack.c.l.b16 %v763
        %v782 = vpack.c.b16 %v775, %v774
        %v783 = vpack.c.b16 %v777, %v776
        %v784 = vpack.c.b16 %v779, %v778
        %v785 = vpack.c.b16 %v781, %v780
        %v787 = vsel %vm365, %v782, 0
        %v790 = vsel %vm365, %v783, 0
        %v793 = vsel %vm365, %v784, 0
        %v796 = vsel %vm365, %v785, 0
        %v799 = vsel %vm378, %v765, 0
        %801 = vmatpush.bf16.msra.mxu0 0
        %802 = vmatpush.bf16.msra.mxu0 0
        %803 = vmatpush.bf16.msra.mxu0 0
        %804 = vmatpush.bf16.msra.mxu0 0
        %805 = vmatpush.bf16.msra.mxu0 0
        %806 = vmatpush.bf16.msra.mxu0 0
        %807 = vmatpush.bf16.msra.mxu0 0
        %808 = vmatpush.bf16.msra.mxu0 %v799
        %809 = vmatmul.bf16.gmra.mxu0 %v787
        %v810 = vpop.f32.mrf.mxu0
        %v811 = vadd.f32 0.0, %v810
        %v812 = vpop.f32.mrf.mxu0
        %v813 = vadd.f32 0.0, %v812
        %814 = vmatmul.bf16.gmra.mxu0 %v790
        %v815 = vpop.f32.mrf.mxu0
        %v816 = vadd.f32 0.0, %v815
        %v817 = vpop.f32.mrf.mxu0
        %v818 = vadd.f32 0.0, %v817
        %819 = vmatmul.bf16.gmra.mxu0 %v793
        %v820 = vpop.f32.mrf.mxu0
        %v821 = vadd.f32 0.0, %v820
        %v822 = vpop.f32.mrf.mxu0
        %v823 = vadd.f32 0.0, %v822
        %824 = vmatmul.bf16.gmra.mxu0 %v796
        %v825 = vpop.f32.mrf.mxu0
        %v826 = vadd.f32 0.0, %v825
        %v827 = vpop.f32.mrf.mxu0
        %v828 = vadd.f32 0.0, %v827
        %829 = vdwg.mxu0
        %v830 = vadd.f32 %v747, %v811
        %v831 = vadd.f32 %v748, %v813
        %v832 = vadd.f32 %v749, %v816
        %v833 = vadd.f32 %v750, %v818
        %v834 = vadd.f32 %v751, %v821
        %v835 = vadd.f32 %v752, %v823
        %v836 = vadd.f32 %v753, %v826
        %v837 = vadd.f32 %v754, %v828
        %v838 = vld [vmem:[%s672] sm:$0xf]
        %v839 = vld [vmem:[%s672 + $0x4] sm:$0x1]
        %v840 = vld [vmem:[%s672 + $0x8] sm:$0xf]
        %v841 = vld [vmem:[%s672 + $0xc] sm:$0x1]
        %v842 = vld [vmem:[%s672 + $0x10] sm:$0xf]
        %v843 = vld [vmem:[%s672 + $0x14] sm:$0x1]
        %v844 = vld [vmem:[%s672 + $0x18] sm:$0xf]
        %v845 = vld [vmem:[%s672 + $0x1c] sm:$0x1]
        %v846 = vld [vmem:[%s672 + $0x20] sm:$0xf]
        %v847 = vld [vmem:[%s672 + $0x24] sm:$0x1]
        %v848 = vld [vmem:[%s672 + $0x28] sm:$0xf]
        %v849 = vld [vmem:[%s672 + $0x2c] sm:$0x1]
        %v850 = vld [vmem:[%s672 + $0x30] sm:$0xf]
        %v851 = vld [vmem:[%s672 + $0x34] sm:$0x1]
        %v852 = vld [vmem:[%s672 + $0x38] sm:$0xf]
        %v853 = vld [vmem:[%s672 + $0x3c] sm:$0x1]
        %v855 = vshrl.u32 %v838, 16
        %v857 = vrot.slane %v855, 4
        %v858 = vshll.u32 %v838, 16
        %v860 = vrot.slane %v858, 5
        %v861 = vor.u32 %v857, %v860
        %v862 = vrot.slane %v861, 4
        %v864 = vshll.u32 %v839, 16
        %v866 = vrot.slane %v864, 5
        %v867 = vsel %vm493, %v862, %v866
        %v869 = vshrl.u32 %v840, 16
        %v871 = vrot.slane %v869, 4
        %v872 = vshll.u32 %v840, 16
        %v874 = vrot.slane %v872, 5
        %v875 = vor.u32 %v871, %v874
        %v876 = vrot.slane %v875, 4
        %v878 = vshll.u32 %v841, 16
        %v880 = vrot.slane %v878, 5
        %v881 = vsel %vm493, %v876, %v880
        %v883 = vshrl.u32 %v842, 16
        %v885 = vrot.slane %v883, 4
        %v886 = vshll.u32 %v842, 16
        %v888 = vrot.slane %v886, 5
        %v889 = vor.u32 %v885, %v888
        %v890 = vrot.slane %v889, 4
        %v892 = vshll.u32 %v843, 16
        %v894 = vrot.slane %v892, 5
        %v895 = vsel %vm493, %v890, %v894
        %v897 = vshrl.u32 %v844, 16
        %v899 = vrot.slane %v897, 4
        %v900 = vshll.u32 %v844, 16
        %v902 = vrot.slane %v900, 5
        %v903 = vor.u32 %v899, %v902
        %v904 = vrot.slane %v903, 4
        %v906 = vshll.u32 %v845, 16
        %v908 = vrot.slane %v906, 5
        %v909 = vsel %vm493, %v904, %v908
        %v911 = vshrl.u32 %v846, 16
        %v913 = vrot.slane %v911, 4
        %v914 = vshll.u32 %v846, 16
        %v916 = vrot.slane %v914, 5
        %v917 = vor.u32 %v913, %v916
        %v918 = vrot.slane %v917, 4
        %v920 = vshll.u32 %v847, 16
        %v922 = vrot.slane %v920, 5
        %v923 = vsel %vm493, %v918, %v922
        %v925 = vshrl.u32 %v848, 16
        %v927 = vrot.slane %v925, 4
        %v928 = vshll.u32 %v848, 16
        %v930 = vrot.slane %v928, 5
        %v931 = vor.u32 %v927, %v930
        %v932 = vrot.slane %v931, 4
        %v934 = vshll.u32 %v849, 16
        %v936 = vrot.slane %v934, 5
        %v937 = vsel %vm493, %v932, %v936
        %v939 = vshrl.u32 %v850, 16
        %v941 = vrot.slane %v939, 4
        %v942 = vshll.u32 %v850, 16
        %v944 = vrot.slane %v942, 5
        %v945 = vor.u32 %v941, %v944
        %v946 = vrot.slane %v945, 4
        %v948 = vshll.u32 %v851, 16
        %v950 = vrot.slane %v948, 5
        %v951 = vsel %vm493, %v946, %v950
        %v953 = vshrl.u32 %v852, 16
        %v955 = vrot.slane %v953, 4
        %v956 = vshll.u32 %v852, 16
        %v958 = vrot.slane %v956, 5
        %v959 = vor.u32 %v955, %v958
        %v960 = vrot.slane %v959, 4
        %v962 = vshll.u32 %v853, 16
        %v964 = vrot.slane %v962, 5
        %v965 = vsel %vm493, %v960, %v964
        %s966 = scalar_lea.vmem %s2, 10
        %v967 = vld [vmem:[%s966] sm:$0x3]
        %v968 = vunpack.c.l.b16 %v867
        %v969 = vunpack.c.l.b16 %v881
        %v970 = vunpack.c.l.b16 %v895
        %v971 = vunpack.c.l.b16 %v909
        %v972 = vunpack.c.l.b16 %v923
        %v973 = vunpack.c.l.b16 %v937
        %v974 = vunpack.c.l.b16 %v951
        %v975 = vunpack.c.l.b16 %v965
        %v976 = vpack.c.b16 %v969, %v968
        %v977 = vpack.c.b16 %v971, %v970
        %v978 = vpack.c.b16 %v973, %v972
        %v979 = vpack.c.b16 %v975, %v974
        %v981 = vsel %vm365, %v976, 0
        %v984 = vsel %vm365, %v977, 0
        %v987 = vsel %vm365, %v978, 0
        %v990 = vsel %vm365, %v979, 0
        %v993 = vsel %vm378, %v967, 0
        %995 = vmatpush.bf16.msra.mxu0 0
        %996 = vmatpush.bf16.msra.mxu0 0
        %997 = vmatpush.bf16.msra.mxu0 0
        %998 = vmatpush.bf16.msra.mxu0 0
        %999 = vmatpush.bf16.msra.mxu0 0
        %1000 = vmatpush.bf16.msra.mxu0 0
        %1001 = vmatpush.bf16.msra.mxu0 0
        %1002 = vmatpush.bf16.msra.mxu0 %v993
        %1003 = vmatmul.bf16.gmra.mxu0 %v981
        %v1004 = vpop.f32.mrf.mxu0
        %v1005 = vadd.f32 0.0, %v1004
        %v1006 = vpop.f32.mrf.mxu0
        %v1007 = vadd.f32 0.0, %v1006
        %1008 = vmatmul.bf16.gmra.mxu0 %v984
        %v1009 = vpop.f32.mrf.mxu0
        %v1010 = vadd.f32 0.0, %v1009
        %v1011 = vpop.f32.mrf.mxu0
        %v1012 = vadd.f32 0.0, %v1011
        %1013 = vmatmul.bf16.gmra.mxu0 %v987
        %v1014 = vpop.f32.mrf.mxu0
        %v1015 = vadd.f32 0.0, %v1014
        %v1016 = vpop.f32.mrf.mxu0
        %v1017 = vadd.f32 0.0, %v1016
        %1018 = vmatmul.bf16.gmra.mxu0 %v990
        %v1019 = vpop.f32.mrf.mxu0
        %v1020 = vadd.f32 0.0, %v1019
        %v1021 = vpop.f32.mrf.mxu0
        %v1022 = vadd.f32 0.0, %v1021
        %1023 = vdwg.mxu0
        %v1024 = vadd.f32 %v830, %v1005
        %v1025 = vadd.f32 %v831, %v1007
        %v1026 = vadd.f32 %v832, %v1010
        %v1027 = vadd.f32 %v833, %v1012
        %v1028 = vadd.f32 %v834, %v1015
        %v1029 = vadd.f32 %v835, %v1017
        %v1030 = vadd.f32 %v836, %v1020
        %v1031 = vadd.f32 %v837, %v1022
        %s1032 = scalar_lea.vmem %s318, 8
        %v1033 = vld [vmem:[%s1032] sm:$0xf]
        %v1034 = vld [vmem:[%s1032 + $0x8] sm:$0xf]
        %v1035 = vld [vmem:[%s1032 + $0x10] sm:$0xf]
        %v1036 = vld [vmem:[%s1032 + $0x18] sm:$0xf]
        %v1037 = vld [vmem:[%s1032 + $0x20] sm:$0xf]
        %v1038 = vld [vmem:[%s1032 + $0x28] sm:$0xf]
        %v1039 = vld [vmem:[%s1032 + $0x30] sm:$0xf]
        %v1040 = vld [vmem:[%s1032 + $0x38] sm:$0xf]
        %s1041 = scalar_lea.vmem %s2, 12
        %v1042 = vld [vmem:[%s1041] sm:$0x3]
        %v1051 = vunpack.c.l.b16 %v1033
        %v1052 = vunpack.c.l.b16 %v1034
        %v1053 = vunpack.c.l.b16 %v1035
        %v1054 = vunpack.c.l.b16 %v1036
        %v1055 = vunpack.c.l.b16 %v1037
        %v1056 = vunpack.c.l.b16 %v1038
        %v1057 = vunpack.c.l.b16 %v1039
        %v1058 = vunpack.c.l.b16 %v1040
        %v1059 = vpack.c.b16 %v1052, %v1051
        %v1060 = vpack.c.b16 %v1054, %v1053
        %v1061 = vpack.c.b16 %v1056, %v1055
        %v1062 = vpack.c.b16 %v1058, %v1057
        %v1064 = vsel %vm365, %v1059, 0
        %v1067 = vsel %vm365, %v1060, 0
        %v1070 = vsel %vm365, %v1061, 0
        %v1073 = vsel %vm365, %v1062, 0
        %v1076 = vsel %vm378, %v1042, 0
        %1078 = vmatpush.bf16.msra.mxu0 0
        %1079 = vmatpush.bf16.msra.mxu0 0
        %1080 = vmatpush.bf16.msra.mxu0 0
        %1081 = vmatpush.bf16.msra.mxu0 0
        %1082 = vmatpush.bf16.msra.mxu0 0
        %1083 = vmatpush.bf16.msra.mxu0 0
        %1084 = vmatpush.bf16.msra.mxu0 0
        %1085 = vmatpush.bf16.msra.mxu0 %v1076
        %1086 = vmatmul.bf16.gmra.mxu0 %v1064
        %v1087 = vpop.f32.mrf.mxu0
        %v1088 = vadd.f32 0.0, %v1087
        %v1089 = vpop.f32.mrf.mxu0
        %v1090 = vadd.f32 0.0, %v1089
        %1091 = vmatmul.bf16.gmra.mxu0 %v1067
        %v1092 = vpop.f32.mrf.mxu0
        %v1093 = vadd.f32 0.0, %v1092
        %v1094 = vpop.f32.mrf.mxu0
        %v1095 = vadd.f32 0.0, %v1094
        %1096 = vmatmul.bf16.gmra.mxu0 %v1070
        %v1097 = vpop.f32.mrf.mxu0
        %v1098 = vadd.f32 0.0, %v1097
        %v1099 = vpop.f32.mrf.mxu0
        %v1100 = vadd.f32 0.0, %v1099
        %1101 = vmatmul.bf16.gmra.mxu0 %v1073
        %v1102 = vpop.f32.mrf.mxu0
        %v1103 = vadd.f32 0.0, %v1102
        %v1104 = vpop.f32.mrf.mxu0
        %v1105 = vadd.f32 0.0, %v1104
        %1106 = vdwg.mxu0
        %v1107 = vadd.f32 %v1024, %v1088
        %v1108 = vadd.f32 %v1025, %v1090
        %v1109 = vadd.f32 %v1026, %v1093
        %v1110 = vadd.f32 %v1027, %v1095
        %v1111 = vadd.f32 %v1028, %v1098
        %v1112 = vadd.f32 %v1029, %v1100
        %v1113 = vadd.f32 %v1030, %v1103
        %v1114 = vadd.f32 %v1031, %v1105
        %s1115 = scalar_lea.vmem %s318, 80
        %v1116 = vld [vmem:[%s1115] sm:$0xf]
        %v1117 = vld [vmem:[%s1115 + $0x8] sm:$0xf]
        %v1118 = vld [vmem:[%s1115 + $0x10] sm:$0xf]
        %v1119 = vld [vmem:[%s1115 + $0x18] sm:$0xf]
        %v1120 = vld [vmem:[%s1115 + $0x20] sm:$0xf]
        %v1121 = vld [vmem:[%s1115 + $0x28] sm:$0xf]
        %v1122 = vld [vmem:[%s1115 + $0x30] sm:$0xf]
        %v1123 = vld [vmem:[%s1115 + $0x38] sm:$0xf]
        %s1124 = scalar_lea.vmem %s2, 14
        %v1125 = vld [vmem:[%s1124] sm:$0x3]
        %v1134 = vunpack.c.l.b16 %v1116
        %v1135 = vunpack.c.l.b16 %v1117
        %v1136 = vunpack.c.l.b16 %v1118
        %v1137 = vunpack.c.l.b16 %v1119
        %v1138 = vunpack.c.l.b16 %v1120
        %v1139 = vunpack.c.l.b16 %v1121
        %v1140 = vunpack.c.l.b16 %v1122
        %v1141 = vunpack.c.l.b16 %v1123
        %v1142 = vpack.c.b16 %v1135, %v1134
        %v1143 = vpack.c.b16 %v1137, %v1136
        %v1144 = vpack.c.b16 %v1139, %v1138
        %v1145 = vpack.c.b16 %v1141, %v1140
        %v1147 = vsel %vm365, %v1142, 0
        %v1150 = vsel %vm365, %v1143, 0
        %v1153 = vsel %vm365, %v1144, 0
        %v1156 = vsel %vm365, %v1145, 0
        %v1159 = vsel %vm378, %v1125, 0
        %1161 = vmatpush.bf16.msra.mxu0 0
        %1162 = vmatpush.bf16.msra.mxu0 0
        %1163 = vmatpush.bf16.msra.mxu0 0
        %1164 = vmatpush.bf16.msra.mxu0 0
        %1165 = vmatpush.bf16.msra.mxu0 0
        %1166 = vmatpush.bf16.msra.mxu0 0
        %1167 = vmatpush.bf16.msra.mxu0 0
        %1168 = vmatpush.bf16.msra.mxu0 %v1159
        %1169 = vmatmul.bf16.gmra.mxu0 %v1147
        %v1170 = vpop.f32.mrf.mxu0
        %v1171 = vadd.f32 0.0, %v1170
        %v1172 = vpop.f32.mrf.mxu0
        %v1173 = vadd.f32 0.0, %v1172
        %1174 = vmatmul.bf16.gmra.mxu0 %v1150
        %v1175 = vpop.f32.mrf.mxu0
        %v1176 = vadd.f32 0.0, %v1175
        %v1177 = vpop.f32.mrf.mxu0
        %v1178 = vadd.f32 0.0, %v1177
        %1179 = vmatmul.bf16.gmra.mxu0 %v1153
        %v1180 = vpop.f32.mrf.mxu0
        %v1181 = vadd.f32 0.0, %v1180
        %v1182 = vpop.f32.mrf.mxu0
        %v1183 = vadd.f32 0.0, %v1182
        %1184 = vmatmul.bf16.gmra.mxu0 %v1156
        %v1185 = vpop.f32.mrf.mxu0
        %v1186 = vadd.f32 0.0, %v1185
        %v1187 = vpop.f32.mrf.mxu0
        %v1188 = vadd.f32 0.0, %v1187
        %1189 = vdwg.mxu0
        %v1190 = vadd.f32 %v1107, %v1171
        %v1191 = vadd.f32 %v1108, %v1173
        %v1192 = vadd.f32 %v1109, %v1176
        %v1193 = vadd.f32 %v1110, %v1178
        %v1194 = vadd.f32 %v1111, %v1181
        %v1195 = vadd.f32 %v1112, %v1183
        %v1196 = vadd.f32 %v1113, %v1186
        %v1197 = vadd.f32 %v1114, %v1188
        %v1198 = vld [vmem:[%s1032] sm:$0xf]
        %v1199 = vld [vmem:[%s1032 + $0x4] sm:$0x1]
        %v1200 = vld [vmem:[%s1032 + $0x8] sm:$0xf]
        %v1201 = vld [vmem:[%s1032 + $0xc] sm:$0x1]
        %v1202 = vld [vmem:[%s1032 + $0x10] sm:$0xf]
        %v1203 = vld [vmem:[%s1032 + $0x14] sm:$0x1]
        %v1204 = vld [vmem:[%s1032 + $0x18] sm:$0xf]
        %v1205 = vld [vmem:[%s1032 + $0x1c] sm:$0x1]
        %v1206 = vld [vmem:[%s1032 + $0x20] sm:$0xf]
        %v1207 = vld [vmem:[%s1032 + $0x24] sm:$0x1]
        %v1208 = vld [vmem:[%s1032 + $0x28] sm:$0xf]
        %v1209 = vld [vmem:[%s1032 + $0x2c] sm:$0x1]
        %v1210 = vld [vmem:[%s1032 + $0x30] sm:$0xf]
        %v1211 = vld [vmem:[%s1032 + $0x34] sm:$0x1]
        %v1212 = vld [vmem:[%s1032 + $0x38] sm:$0xf]
        %v1213 = vld [vmem:[%s1032 + $0x3c] sm:$0x1]
        %v1215 = vshrl.u32 %v1198, 16
        %v1217 = vrot.slane %v1215, 4
        %v1218 = vshll.u32 %v1198, 16
        %v1220 = vrot.slane %v1218, 5
        %v1221 = vor.u32 %v1217, %v1220
        %v1222 = vrot.slane %v1221, 4
        %v1224 = vshll.u32 %v1199, 16
        %v1226 = vrot.slane %v1224, 5
        %v1227 = vsel %vm493, %v1222, %v1226
        %v1229 = vshrl.u32 %v1200, 16
        %v1231 = vrot.slane %v1229, 4
        %v1232 = vshll.u32 %v1200, 16
        %v1234 = vrot.slane %v1232, 5
        %v1235 = vor.u32 %v1231, %v1234
        %v1236 = vrot.slane %v1235, 4
        %v1238 = vshll.u32 %v1201, 16
        %v1240 = vrot.slane %v1238, 5
        %v1241 = vsel %vm493, %v1236, %v1240
        %v1243 = vshrl.u32 %v1202, 16
        %v1245 = vrot.slane %v1243, 4
        %v1246 = vshll.u32 %v1202, 16
        %v1248 = vrot.slane %v1246, 5
        %v1249 = vor.u32 %v1245, %v1248
        %v1250 = vrot.slane %v1249, 4
        %v1252 = vshll.u32 %v1203, 16
        %v1254 = vrot.slane %v1252, 5
        %v1255 = vsel %vm493, %v1250, %v1254
        %v1257 = vshrl.u32 %v1204, 16
        %v1259 = vrot.slane %v1257, 4
        %v1260 = vshll.u32 %v1204, 16
        %v1262 = vrot.slane %v1260, 5
        %v1263 = vor.u32 %v1259, %v1262
        %v1264 = vrot.slane %v1263, 4
        %v1266 = vshll.u32 %v1205, 16
        %v1268 = vrot.slane %v1266, 5
        %v1269 = vsel %vm493, %v1264, %v1268
        %v1271 = vshrl.u32 %v1206, 16
        %v1273 = vrot.slane %v1271, 4
        %v1274 = vshll.u32 %v1206, 16
        %v1276 = vrot.slane %v1274, 5
        %v1277 = vor.u32 %v1273, %v1276
        %v1278 = vrot.slane %v1277, 4
        %v1280 = vshll.u32 %v1207, 16
        %v1282 = vrot.slane %v1280, 5
        %v1283 = vsel %vm493, %v1278, %v1282
        %v1285 = vshrl.u32 %v1208, 16
        %v1287 = vrot.slane %v1285, 4
        %v1288 = vshll.u32 %v1208, 16
        %v1290 = vrot.slane %v1288, 5
        %v1291 = vor.u32 %v1287, %v1290
        %v1292 = vrot.slane %v1291, 4
        %v1294 = vshll.u32 %v1209, 16
        %v1296 = vrot.slane %v1294, 5
        %v1297 = vsel %vm493, %v1292, %v1296
        %v1299 = vshrl.u32 %v1210, 16
        %v1301 = vrot.slane %v1299, 4
        %v1302 = vshll.u32 %v1210, 16
        %v1304 = vrot.slane %v1302, 5
        %v1305 = vor.u32 %v1301, %v1304
        %v1306 = vrot.slane %v1305, 4
        %v1308 = vshll.u32 %v1211, 16
        %v1310 = vrot.slane %v1308, 5
        %v1311 = vsel %vm493, %v1306, %v1310
        %v1313 = vshrl.u32 %v1212, 16
        %v1315 = vrot.slane %v1313, 4
        %v1316 = vshll.u32 %v1212, 16
        %v1318 = vrot.slane %v1316, 5
        %v1319 = vor.u32 %v1315, %v1318
        %v1320 = vrot.slane %v1319, 4
        %v1322 = vshll.u32 %v1213, 16
        %v1324 = vrot.slane %v1322, 5
        %v1325 = vsel %vm493, %v1320, %v1324
        %s1326 = scalar_lea.vmem %s2, 16
        %v1327 = vld [vmem:[%s1326] sm:$0x3]
        %v1328 = vunpack.c.l.b16 %v1227
        %v1329 = vunpack.c.l.b16 %v1241
        %v1330 = vunpack.c.l.b16 %v1255
        %v1331 = vunpack.c.l.b16 %v1269
        %v1332 = vunpack.c.l.b16 %v1283
        %v1333 = vunpack.c.l.b16 %v1297
        %v1334 = vunpack.c.l.b16 %v1311
        %v1335 = vunpack.c.l.b16 %v1325
        %v1336 = vpack.c.b16 %v1329, %v1328
        %v1337 = vpack.c.b16 %v1331, %v1330
        %v1338 = vpack.c.b16 %v1333, %v1332
        %v1339 = vpack.c.b16 %v1335, %v1334
        %v1341 = vsel %vm365, %v1336, 0
        %v1344 = vsel %vm365, %v1337, 0
        %v1347 = vsel %vm365, %v1338, 0
        %v1350 = vsel %vm365, %v1339, 0
        %v1353 = vsel %vm378, %v1327, 0
        %1355 = vmatpush.bf16.msra.mxu0 0
        %1356 = vmatpush.bf16.msra.mxu0 0
        %1357 = vmatpush.bf16.msra.mxu0 0
        %1358 = vmatpush.bf16.msra.mxu0 0
        %1359 = vmatpush.bf16.msra.mxu0 0
        %1360 = vmatpush.bf16.msra.mxu0 0
        %1361 = vmatpush.bf16.msra.mxu0 0
        %1362 = vmatpush.bf16.msra.mxu0 %v1353
        %1363 = vmatmul.bf16.gmra.mxu0 %v1341
        %v1364 = vpop.f32.mrf.mxu0
        %v1365 = vadd.f32 0.0, %v1364
        %v1366 = vpop.f32.mrf.mxu0
        %v1367 = vadd.f32 0.0, %v1366
        %1368 = vmatmul.bf16.gmra.mxu0 %v1344
        %v1369 = vpop.f32.mrf.mxu0
        %v1370 = vadd.f32 0.0, %v1369
        %v1371 = vpop.f32.mrf.mxu0
        %v1372 = vadd.f32 0.0, %v1371
        %1373 = vmatmul.bf16.gmra.mxu0 %v1347
        %v1374 = vpop.f32.mrf.mxu0
        %v1375 = vadd.f32 0.0, %v1374
        %v1376 = vpop.f32.mrf.mxu0
        %v1377 = vadd.f32 0.0, %v1376
        %1378 = vmatmul.bf16.gmra.mxu0 %v1350
        %v1379 = vpop.f32.mrf.mxu0
        %v1380 = vadd.f32 0.0, %v1379
        %v1381 = vpop.f32.mrf.mxu0
        %v1382 = vadd.f32 0.0, %v1381
        %1383 = vdwg.mxu0
        %v1384 = vadd.f32 %v1190, %v1365
        %v1385 = vadd.f32 %v1191, %v1367
        %v1386 = vadd.f32 %v1192, %v1370
        %v1387 = vadd.f32 %v1193, %v1372
        %v1388 = vadd.f32 %v1194, %v1375
        %v1389 = vadd.f32 %v1195, %v1377
        %v1390 = vadd.f32 %v1196, %v1380
        %v1391 = vadd.f32 %v1197, %v1382
        %v1392 = vld [vmem:[%s3] sm:$0x1]
        %v1394 = vperm.slane %v1392, 0
        %v1396 = vadd.f32 %v1384, %v1394
        %v1397 = vadd.f32 %v1385, %v1394
        %v1398 = vadd.f32 %v1386, %v1394
        %v1399 = vadd.f32 %v1387, %v1394
        %v1400 = vadd.f32 %v1388, %v1394
        %v1401 = vadd.f32 %v1389, %v1394
        %v1402 = vadd.f32 %v1390, %v1394
        %v1403 = vadd.f32 %v1391, %v1394
        %v1404 = vmax.f32 %v1396, 0.0
        %v1405 = vmax.f32 %v1397, 0.0
        %v1406 = vmax.f32 %v1398, 0.0
        %v1407 = vmax.f32 %v1399, 0.0
        %v1408 = vmax.f32 %v1400, 0.0
        %v1409 = vmax.f32 %v1401, 0.0
        %v1410 = vmax.f32 %v1402, 0.0
        %v1411 = vmax.f32 %v1403, 0.0
        %v1412 = vpack.c.bf16 %v1405, %v1404
        %v1413 = vpack.c.bf16 %v1407, %v1406
        %v1414 = vpack.c.bf16 %v1409, %v1408
        %v1415 = vpack.c.bf16 %v1411, %v1410
        %v1416 = vld [vmem:[%s4] sm:$0x3]
        %v1417 = vld [vmem:[%s5] sm:$0x1]
        %v1419 = vperm.slane %v1417, 0
        %v1422 = vsel %vm365, %v1412, 0
        %v1425 = vsel %vm365, %v1413, 0
        %v1428 = vsel %vm365, %v1414, 0
        %v1431 = vsel %vm365, %v1415, 0
        %v1434 = vsel %vm378, %v1416, 0
        %1436 = vmatpush.bf16.msra.mxu0 0
        %1437 = vmatpush.bf16.msra.mxu0 0
        %1438 = vmatpush.bf16.msra.mxu0 0
        %1439 = vmatpush.bf16.msra.mxu0 0
        %1440 = vmatpush.bf16.msra.mxu0 0
        %1441 = vmatpush.bf16.msra.mxu0 0
        %1442 = vmatpush.bf16.msra.mxu0 0
        %1443 = vmatpush.bf16.msra.mxu0 %v1434
        %1444 = vmatmul.bf16.gmra.mxu0 %v1422
        %v1445 = vpop.f32.mrf.mxu0
        %v1446 = vadd.f32 %v1419, %v1445
        %v1447 = vpop.f32.mrf.mxu0
        %v1448 = vadd.f32 %v1419, %v1447
        %1449 = vmatmul.bf16.gmra.mxu0 %v1425
        %v1450 = vpop.f32.mrf.mxu0
        %v1451 = vadd.f32 %v1419, %v1450
        %v1452 = vpop.f32.mrf.mxu0
        %v1453 = vadd.f32 %v1419, %v1452
        %1454 = vmatmul.bf16.gmra.mxu0 %v1428
        %v1455 = vpop.f32.mrf.mxu0
        %v1456 = vadd.f32 %v1419, %v1455
        %v1457 = vpop.f32.mrf.mxu0
        %v1458 = vadd.f32 %v1419, %v1457
        %1459 = vmatmul.bf16.gmra.mxu0 %v1431
        %v1460 = vpop.f32.mrf.mxu0
        %v1461 = vadd.f32 %v1419, %v1460
        %v1462 = vpop.f32.mrf.mxu0
        %v1463 = vadd.f32 %v1419, %v1462
        %1464 = vdwg.mxu0
        %v1465 = vld [vmem:[%s323] sm:$0xf]
        %v1466 = vld [vmem:[%s323 + $0x4] sm:$0xf]
        %v1467 = vld [vmem:[%s323 + $0x8] sm:$0xf]
        %v1468 = vld [vmem:[%s323 + $0xc] sm:$0xf]
        %v1469 = vld [vmem:[%s323 + $0x10] sm:$0xf]
        %v1470 = vld [vmem:[%s323 + $0x14] sm:$0xf]
        %v1471 = vld [vmem:[%s323 + $0x18] sm:$0xf]
        %v1472 = vld [vmem:[%s323 + $0x1c] sm:$0xf]
        %v1473 = vld [vmem:[%s6] sm:$0xf]
        %v1474 = vld [vmem:[%s7] sm:$0x1]
        %v1476 = vperm.slane %v1474, 0
        %v1486 = vunpack.c.l.b16 %v1465
        %v1487 = vunpack.c.l.b16 %v1466
        %v1488 = vunpack.c.l.b16 %v1467
        %v1489 = vunpack.c.l.b16 %v1468
        %v1490 = vunpack.c.l.b16 %v1469
        %v1491 = vunpack.c.l.b16 %v1470
        %v1492 = vunpack.c.l.b16 %v1471
        %v1493 = vunpack.c.l.b16 %v1472
        %v1494 = vpack.c.b16 %v1487, %v1486
        %v1495 = vpack.c.b16 %v1489, %v1488
        %v1496 = vpack.c.b16 %v1491, %v1490
        %v1497 = vpack.c.b16 %v1493, %v1492
        %vm1498 = vcmask 64512
        %v1500 = vsel %vm1498, %v1494, 0
        %v1503 = vsel %vm1498, %v1495, 0
        %v1506 = vsel %vm1498, %v1496, 0
        %v1509 = vsel %vm1498, %v1497, 0
        %vm1511 = vcmask 1043456
        %v1513 = vsel %vm1511, %v1473, 0
        %1515 = vmatpush.bf16.msra.mxu0 0
        %1516 = vmatpush.bf16.msra.mxu0 0
        %1517 = vmatpush.bf16.msra.mxu0 0
        %1518 = vmatpush.bf16.msra.mxu0 0
        %1519 = vmatpush.bf16.msra.mxu0 0
        %1520 = vmatpush.bf16.msra.mxu0 0
        %1521 = vmatpush.bf16.msra.mxu0 0
        %1522 = vmatpush.bf16.msra.mxu0 %v1513
        %1523 = vmatmul.bf16.gmra.mxu0 %v1500
        %v1524 = vpop.f32.mrf.mxu0
        %v1525 = vadd.f32 %v1476, %v1524
        %v1526 = vpop.f32.mrf.mxu0
        %v1527 = vadd.f32 %v1476, %v1526
        %1528 = vmatmul.bf16.gmra.mxu0 %v1503
        %v1529 = vpop.f32.mrf.mxu0
        %v1530 = vadd.f32 %v1476, %v1529
        %v1531 = vpop.f32.mrf.mxu0
        %v1532 = vadd.f32 %v1476, %v1531
        %1533 = vmatmul.bf16.gmra.mxu0 %v1506
        %v1534 = vpop.f32.mrf.mxu0
        %v1535 = vadd.f32 %v1476, %v1534
        %v1536 = vpop.f32.mrf.mxu0
        %v1537 = vadd.f32 %v1476, %v1536
        %1538 = vmatmul.bf16.gmra.mxu0 %v1509
        %v1539 = vpop.f32.mrf.mxu0
        %v1540 = vadd.f32 %v1476, %v1539
        %v1541 = vpop.f32.mrf.mxu0
        %v1542 = vadd.f32 %v1476, %v1541
        %1543 = vdwg.mxu0
        %v1544 = vadd.f32 %v1446, %v1525
        %v1545 = vadd.f32 %v1448, %v1527
        %v1546 = vadd.f32 %v1451, %v1530
        %v1547 = vadd.f32 %v1453, %v1532
        %v1548 = vadd.f32 %v1456, %v1535
        %v1549 = vadd.f32 %v1458, %v1537
        %v1550 = vadd.f32 %v1461, %v1540
        %v1551 = vadd.f32 %v1463, %v1542
        %v1552 = vmax.f32 %v1544, 0.0
        %v1553 = vmax.f32 %v1545, 0.0
        %v1554 = vmax.f32 %v1546, 0.0
        %v1555 = vmax.f32 %v1547, 0.0
        %v1556 = vmax.f32 %v1548, 0.0
        %v1557 = vmax.f32 %v1549, 0.0
        %v1558 = vmax.f32 %v1550, 0.0
        %v1559 = vmax.f32 %v1551, 0.0
        %vm1560 = vcmask 130048
        %1561 = vst.msk [vmem:[%s313] sm:$0xff] %vm1560, %v1552
        %1562 = vst.msk [vmem:[%s313 + $0x8] sm:$0xff] %vm1560, %v1553
        %1563 = vst.msk [vmem:[%s313 + $0x10] sm:$0xff] %vm1560, %v1554
        %1564 = vst.msk [vmem:[%s313 + $0x18] sm:$0xff] %vm1560, %v1555
        %1565 = vst.msk [vmem:[%s313 + $0x20] sm:$0xff] %vm1560, %v1556
        %1566 = vst.msk [vmem:[%s313 + $0x28] sm:$0xff] %vm1560, %v1557
        %1567 = vst.msk [vmem:[%s313 + $0x30] sm:$0xff] %vm1560, %v1558
        %1568 = vst.msk [vmem:[%s313 + $0x38] sm:$0xff] %vm1560, %v1559
        %s1569 = sand.u32 %s208, 1
        %s1570 = scalar_lea.sflag [#allocation3], %s1569
        %s1571 = sand.u32 %s208, 1
        %s1572 = smul.addr %s1571, 64
        %s1573 = scalar_lea.vmem [#allocation2], %s1572
        // Predicated region
        $region53: #{bottleneck_psp_forward.3} parent=51 // pred_check
          %p1574 = pneg %p218
        $region54: #{bottleneck_psp_forward.3} parent=51 // pred_check_branch
          %1576 = sbr.rel (%p1574) target = $region56
        $region55: #{bottleneck_psp_forward.3} parent=51 // pred_region
          %1578 = vsyncadd %s1570, 0
          %s1579 = smul.addr %s22, 8
          %s1580 = smul.addr %s1579, 8
          %s1581 = scalar_lea.hbm %s8, %s1580
          %s1582 = sshll.u32 %s1573, 4
          %s1583 = int_to_ptr.vmem [resolvable:$true] %s1582
          %s1584 = sshll.u32 %s1581, 4
          %s1585 = int_to_ptr.hbm [resolvable:$true] %s1584
          %1590 = dma.vmem_to_hbm [thread:$0]  %s1583, 1024, %s1585, %s1570, 128, 128, 8
        $region56: #{bottleneck_psp_forward.3} parent=51 // pred_fallthru
          _
      $region52: #{bottleneck_psp_forward.3} parent=5 // pred_fallthru
        _
      %p1591 = scmp.le.s32.totalorder 2, %s17
      // Predicated region
      $region57: #{bottleneck_psp_forward.3} parent=5 // pred_check
        %p1592 = pneg %p1591
      $region58: #{bottleneck_psp_forward.3} parent=5 // pred_check_branch
        %1594 = sbr.rel (%p1592) target = $region60
      $region59: #{bottleneck_psp_forward.3} parent=5 // pred_region
        %s1595 = ssub.s32 %s17, 2
        // Predicated region
        $region61: #{bottleneck_psp_forward.3} parent=59 // pred_check
          %p1596 = pneg %p224
        $region62: #{bottleneck_psp_forward.3} parent=59 // pred_check_branch
          %1598 = sbr.rel (%p1596) target = $region64
        $region63: #{bottleneck_psp_forward.3} parent=59 // pred_region
          %s1599 = sand.u32 %s209, 1
          %s1600 = scalar_lea.sflag [#allocation3], %s1599
          %s1601 = sand.u32 %s209, 1
          %s1602 = smul.addr %s1601, 64
          %s1603 = scalar_lea.vmem [#allocation2], %s1602
          %1605 = dma.done %s1600, 1024
        $region64: #{bottleneck_psp_forward.3} parent=59 // pred_fallthru
          _
      $region60: #{bottleneck_psp_forward.3} parent=5 // pred_fallthru
        _
    $region6: #{bottleneck_psp_forward.3} parent=1 // loop_footer
      %s21 = sadd.s32 1, %s17
    $region7: #{bottleneck_psp_forward.3} parent=1 // loop_footer_branch
      %16 = sbr.rel target = $region3
    $region8: #{bottleneck_psp_forward.3} parent=1 // loop_exit
      _
    %1606 = vsyncpa [#allocation3], 1
    %s1607 = scalar_lea.sflag [#allocation3], 1
    %1608 = vsyncpa %s1607, 1

</llo_original>
